<compile_context>
chip_gen: v6e
topology: v6e:2x2x1
jax: 0.10.0
libtpu: 0.0.40
codegen_flags: <defaults>
</compile_context>

<pallas_src>
import functools

import jax
import jax.numpy as jnp
from jax.experimental import pallas as pl
from jax.experimental.pallas import tpu as pltpu


def _spotlight_kernel(*refs, radius, k, max_noise, has_noise):
    if has_noise:
        cur_ref, prevT_ref, x2_ref, y2_ref, noise_ref, out_ref = refs
    else:
        cur_ref, prevT_ref, x2_ref, y2_ref, out_ref = refs
        noise_ref = None

    x = cur_ref[0]      # (TN, D)  native dtype (f32 or bf16)
    yt = prevT_ref[0]   # (D, TM)  native dtype, already transposed in wrapper

    # Pairwise squared distance via ||x||^2 + ||y||^2 - 2 x.y.  Norms arrive
    # precomputed (f32) from the wrapper; the MXU contraction is the canonical
    # (TN,D) x (D,TM) form, so no transpose/relayout happens in-kernel.
    xy = jax.lax.dot_general(
        x, yt, (((1,), (0,)), ((), ())), preferred_element_type=jnp.float32
    )                                                     # (TN, TM) f32
    sq = jnp.maximum(x2_ref[0] + y2_ref[0] - 2.0 * xy, 0.0)  # clamp fp cancellation
    dist = jnp.sqrt(sq)                                       # cdist, p=2

    cost = jnp.maximum(k * (dist - radius), 0.0)
    if has_noise:
        cost = cost + noise_ref[0].astype(jnp.float32) * max_noise

    out_ref[0] = cost.astype(out_ref.dtype)


def _round_up(x, m):
    return (x + m - 1) // m * m


def _pick_tile(extent, base, cap):
    """Largest multiple of `base` dividing `extent` (itself a multiple of base),
    capped at `cap`."""
    best = base
    d = base
    while d <= min(extent, cap):
        if extent % d == 0:
            best = d
        d += base
    return best


def q_cost_function(prev_X, current_X, *, radius=0.1, k=1.0, max_noise=1e-5,
                    discount=0.0, seed=0):
    """Spotlight cost. prev_X: (B, M, D), current_X: (B, N, D) -> (B, N, M)."""
    B, N, D = current_X.shape
    Bp, M, Dp = prev_X.shape
    assert B == Bp and D == Dp

    if discount > 0.0:
        # TODO(synk): discount branch (discount > 0 with previous_cost) not implemented.
        raise NotImplementedError("discount > 0.0 is not supported by this kernel")

    out_dtype = jnp.result_type(current_X.dtype, prev_X.dtype)
    out_itemsize = jnp.dtype(out_dtype).itemsize
    in_itemsize = jnp.dtype(current_X.dtype).itemsize

    # Sublane base 16 for packed bf16 rows, 8 for f32; lane base 128 for M.
    base_n = 16 if in_itemsize == 2 else 8
    Npad = _round_up(N, base_n)
    Mpad = _round_up(M, 128)
    # Lane-dense output tiles; caps keep double-buffered out+noise+temps < ~20 MiB
    # so the pipeline fits v7x's 64 MiB VMEM with room to spare.
    TN = _pick_tile(Npad, base_n, 512)
    TM = _pick_tile(Mpad, 128, 1024)
    grid = (B, Npad // TN, Mpad // TM)

    cur = current_X
    prev = prev_X
    if Npad != N:
        cur = jnp.pad(cur, ((0, 0), (0, Npad - N), (0, 0)))
    if Mpad != M:
        prev = jnp.pad(prev, ((0, 0), (0, Mpad - M), (0, 0)))

    # Precompute squared norms (f32) once in XLA: removes per-tile cross-lane
    # reductions / full-tile casts from the kernel body.
    x2 = jnp.sum(cur.astype(jnp.float32) ** 2, axis=-1, keepdims=True)   # (B, Npad, 1)
    y2 = jnp.sum(prev.astype(jnp.float32) ** 2, axis=-1)[:, None, :]     # (B, 1, Mpad)
    # Pre-transpose prev so the kernel's matmul needs no relayout.
    prevT = jnp.swapaxes(prev, 1, 2)                                     # (B, D, Mpad)

    has_noise = float(max_noise) != 0.0
    inputs = [cur, prevT, x2, y2]
    in_specs = [
        pl.BlockSpec((1, TN, D), lambda b, i, j: (b, i, 0)),
        pl.BlockSpec((1, D, TM), lambda b, i, j: (b, 0, j)),
        pl.BlockSpec((1, TN, 1), lambda b, i, j: (b, i, 0)),
        pl.BlockSpec((1, 1, TM), lambda b, i, j: (b, 0, j)),
    ]
    if has_noise:
        # Gaussian noise generated once, in the output dtype, streamed as a
        # tiled input (tiling-independent realization; works on all backends).
        noise = jax.random.normal(jax.random.PRNGKey(seed), (B, Npad, Mpad),
                                  dtype=out_dtype)
        inputs.append(noise)
        in_specs.append(pl.BlockSpec((1, TN, TM), lambda b, i, j: (b, i, j)))

    kernel = functools.partial(
        _spotlight_kernel, radius=float(radius), k=float(k),
        max_noise=float(max_noise), has_noise=has_noise,
    )

    cost_est = pl.CostEstimate(
        flops=2 * B * Npad * Mpad * D,
        transcendentals=B * Npad * Mpad,  # sqrt
        bytes_accessed=(1 + int(has_noise)) * out_itemsize * B * Npad * Mpad
                       + in_itemsize * B * (Npad + Mpad) * D,
    )

    out = pl.pallas_call(
        kernel,
        out_shape=jax.ShapeDtypeStruct((B, Npad, Mpad), out_dtype),
        grid=grid,
        in_specs=in_specs,
        out_specs=pl.BlockSpec((1, TN, TM), lambda b, i, j: (b, i, j)),
        compiler_params=pltpu.CompilerParams(
            # No reduction axis -> everything parallel (megacore-friendly).
            dimension_semantics=("parallel", "parallel", "parallel"),
            vmem_limit_bytes=32 * 1024 * 1024,
        ),
        cost_estimate=cost_est,
    )(*inputs)

    if Npad != N or Mpad != M:
        out = out[:, :N, :M]
    return out


def q_cost_function_ref(prev_X, current_X, *, radius=0.1, k=1.0):
    """Pure-JAX noiseless reference (direct-difference cdist)."""
    diff = current_X[:, :, None, :] - prev_X[:, None, :, :]
    dist = jnp.sqrt(jnp.maximum(jnp.sum(diff * diff, axis=-1), 0.0))
    return jnp.maximum(k * (dist - radius), 0.0)


if __name__ == "__main__":
    key = jax.random.PRNGKey(0)
    k_prev, k_cur, k_prev2, k_cur2 = jax.random.split(key, 4)

    # 1) Aligned f32 shapes, noiseless -> check against direct-difference cdist.
    B, N, M, D = 2, 256, 384, 16
    prev_X = jax.random.normal(k_prev, (B, M, D), dtype=jnp.float32)
    current_X = jax.random.normal(k_cur, (B, N, D), dtype=jnp.float32)

    out0 = jax.block_until_ready(
        q_cost_function(prev_X, current_X, radius=0.1, k=1.0, max_noise=0.0)
    )
    ref0 = q_cost_function_ref(prev_X, current_X, radius=0.1, k=1.0)
    assert out0.shape == (B, N, M) and out0.dtype == jnp.float32
    assert jnp.allclose(out0, ref0, atol=1e-3, rtol=1e-3), "mismatch (no noise)"

    # 2) Full path with Gaussian noise (max_noise=1e-5 -> loose tolerance).
    out1 = jax.block_until_ready(
        q_cost_function(prev_X, current_X, radius=0.1, k=1.0, max_noise=1e-5, seed=42)
    )
    assert jnp.allclose(out1, ref0, atol=2e-3, rtol=2e-3), "mismatch (with noise)"

    # 3) Ragged / non-aligned shapes with B == 1 (exercises the padding path).
    pr = jax.random.normal(k_prev2, (1, 200, 8), dtype=jnp.float32)
    cr = jax.random.normal(k_cur2, (1, 100, 8), dtype=jnp.float32)
    outr = jax.block_until_ready(q_cost_function(pr, cr, max_noise=0.0))
    refr = q_cost_function_ref(pr, cr)
    assert outr.shape == (1, 100, 200)
    assert jnp.allclose(outr, refr, atol=1e-3, rtol=1e-3), "mismatch (ragged)"

    # 4) bf16 in -> bf16 out (halves the HBM writeback vs the old hardcoded f32).
    prev_b = prev_X[:, :256].astype(jnp.bfloat16)
    cur_b = current_X[:, :128].astype(jnp.bfloat16)
    outb = jax.block_until_ready(q_cost_function(prev_b, cur_b, max_noise=0.0))
    assert outb.dtype == jnp.bfloat16 and outb.shape == (2, 128, 256)
    refb = q_cost_function_ref(prev_b.astype(jnp.float32), cur_b.astype(jnp.float32))
    assert jnp.allclose(outb.astype(jnp.float32), refb, atol=0.1, rtol=0.1), "mismatch (bf16)"

    print("KERNEL_OK")
</pallas_src>

<mosaic_0001>
module attributes {stable_mosaic.version = 11 : i64} {
  func.func @_spotlight_kernel(%arg0: i32, %arg1: i32, %arg2: i32, %arg3: memref<1x256x16xf32, #tpu.memory_space<vmem>>, %arg4: memref<1x16x384xf32, #tpu.memory_space<vmem>>, %arg5: memref<1x256x1xf32, #tpu.memory_space<vmem>>, %arg6: memref<1x1x384xf32, #tpu.memory_space<vmem>>, %arg7: memref<1x256x384xf32, #tpu.memory_space<vmem>>) attributes {dimension_semantics = [#tpu.dimension_semantics<parallel>, #tpu.dimension_semantics<parallel>, #tpu.dimension_semantics<parallel>], iteration_bounds = array<i64: 2, 1, 1>, scalar_prefetch = 0 : i64, scratch_operands = 0 : i64, tpu.core_type = #tpu.core_type<tc>, window_params = [{transform_indices = @transform_0, window_bounds = array<i64: 1, 256, 16>}, {transform_indices = @transform_1, window_bounds = array<i64: 1, 16, 384>}, {transform_indices = @transform_2, window_bounds = array<i64: 1, 256, 1>}, {transform_indices = @transform_3, window_bounds = array<i64: 1, 1, 384>}, {transform_indices = @transform_4, window_bounds = array<i64: 1, 256, 384>}]} {
    %c0 = arith.constant 0 : index
    %c0_0 = arith.constant 0 : index
    %c0_1 = arith.constant 0 : index
    %0 = vector.load %arg3[%c0, %c0_0, %c0_1] : memref<1x256x16xf32, #tpu.memory_space<vmem>>, vector<1x256x16xf32>
    %1 = vector.shape_cast %0 : vector<1x256x16xf32> to vector<256x16xf32>
    %c0_2 = arith.constant 0 : index
    %c0_3 = arith.constant 0 : index
    %c0_4 = arith.constant 0 : index
    %2 = vector.load %arg4[%c0_2, %c0_3, %c0_4] : memref<1x16x384xf32, #tpu.memory_space<vmem>>, vector<1x16x384xf32>
    %3 = vector.shape_cast %2 : vector<1x16x384xf32> to vector<16x384xf32>
    %cst = arith.constant dense<0.000000e+00> : vector<256x384xf32>
    %4 = tpu.matmul %1, %3, %cst {dimension_numbers = #tpu.dot_dimension_numbers<[1], [0], [0], [1], [0, 0, 1, 1], [], []>} : vector<256x16xf32>, vector<16x384xf32>, vector<256x384xf32> -> vector<256x384xf32>
    %c0_5 = arith.constant 0 : index
    %c0_6 = arith.constant 0 : index
    %c0_7 = arith.constant 0 : index
    %5 = vector.load %arg5[%c0_5, %c0_6, %c0_7] : memref<1x256x1xf32, #tpu.memory_space<vmem>>, vector<1x256x1xf32>
    %6 = vector.shape_cast %5 : vector<1x256x1xf32> to vector<256x1xf32>
    %c0_8 = arith.constant 0 : index
    %c0_9 = arith.constant 0 : index
    %c0_10 = arith.constant 0 : index
    %7 = vector.load %arg6[%c0_8, %c0_9, %c0_10] : memref<1x1x384xf32, #tpu.memory_space<vmem>>, vector<1x1x384xf32>
    %8 = vector.shape_cast %7 : vector<1x1x384xf32> to vector<1x384xf32>
    %9 = vector.broadcast %6 : vector<256x1xf32> to vector<256x384xf32>
    %10 = vector.broadcast %8 : vector<1x384xf32> to vector<256x384xf32>
    %11 = arith.addf %9, %10 : vector<256x384xf32>
    %cst_11 = arith.constant 2.000000e+00 : f32
    %12 = vector.broadcast %cst_11 : f32 to vector<256x384xf32>
    %13 = arith.mulf %12, %4 : vector<256x384xf32>
    %14 = arith.subf %11, %13 : vector<256x384xf32>
    %cst_12 = arith.constant 0.000000e+00 : f32
    %15 = vector.broadcast %cst_12 : f32 to vector<256x384xf32>
    %16 = arith.maximumf %14, %15 : vector<256x384xf32>
    %17 = math.sqrt %16 : vector<256x384xf32>
    %cst_13 = arith.constant 1.000000e-01 : f32
    %18 = vector.broadcast %cst_13 : f32 to vector<256x384xf32>
    %19 = arith.subf %17, %18 : vector<256x384xf32>
    %cst_14 = arith.constant 1.000000e+00 : f32
    %20 = vector.broadcast %cst_14 : f32 to vector<256x384xf32>
    %21 = arith.mulf %20, %19 : vector<256x384xf32>
    %cst_15 = arith.constant 0.000000e+00 : f32
    %22 = vector.broadcast %cst_15 : f32 to vector<256x384xf32>
    %23 = arith.maximumf %21, %22 : vector<256x384xf32>
    %c0_16 = arith.constant 0 : index
    %c0_17 = arith.constant 0 : index
    %c0_18 = arith.constant 0 : index
    %24 = vector.load %arg7[%c0_16, %c0_17, %c0_18] : memref<1x256x384xf32, #tpu.memory_space<vmem>>, vector<1x256x384xf32>
    %25 = vector.shape_cast %24 : vector<1x256x384xf32> to vector<256x384xf32>
    %26 = vector.shape_cast %23 : vector<256x384xf32> to vector<1x256x384xf32>
    tpu.vector_store %arg7[%c0_16, %c0_17, %c0_18], %26 {strides = array<i32>} : memref<1x256x384xf32, #tpu.memory_space<vmem>>, vector<1x256x384xf32>,
    return
  }
  func.func @transform_0(%arg0: i32, %arg1: i32, %arg2: i32) -> (i32, i32, i32) {
    %c0_i32 = arith.constant 0 : i32
    %c0_i32_0 = arith.constant 0 : i32
    return %arg0, %arg1, %c0_i32 : i32, i32, i32
  }
  func.func @transform_1(%arg0: i32, %arg1: i32, %arg2: i32) -> (i32, i32, i32) {
    %c0_i32 = arith.constant 0 : i32
    %c0_i32_0 = arith.constant 0 : i32
    return %arg0, %c0_i32, %arg2 : i32, i32, i32
  }
  func.func @transform_2(%arg0: i32, %arg1: i32, %arg2: i32) -> (i32, i32, i32) {
    %c0_i32 = arith.constant 0 : i32
    %c0_i32_0 = arith.constant 0 : i32
    return %arg0, %arg1, %c0_i32 : i32, i32, i32
  }
  func.func @transform_3(%arg0: i32, %arg1: i32, %arg2: i32) -> (i32, i32, i32) {
    %c0_i32 = arith.constant 0 : i32
    %c0_i32_0 = arith.constant 0 : i32
    return %arg0, %c0_i32, %arg2 : i32, i32, i32
  }
  func.func @transform_4(%arg0: i32, %arg1: i32, %arg2: i32) -> (i32, i32, i32) {
    %c0_i32 = arith.constant 0 : i32
    return %arg0, %arg1, %arg2 : i32, i32, i32
  }
}

</mosaic_0001>

<llo_original>
// kernel: tpu_custom_call.1
$region0: #{tpu_custom_call.1}
  #allocation0 [shape = 'u32[]', space=smem, size = 0x4, offset = 0x4, fixed_abs, tag = 'smem constant byte address 0x4 - core index']
  #allocation1 [shape = 'u32[144,128]{1,0:T(1,128)}', space=vmem, size = 0x12000, scoped, tag = 'internal scratch']
  %s0 = inlined_call_operand.vmem [shape: f32[2,256,16], index: 0, kind: input, shape index: {}]
  %s1 = inlined_call_operand.vmem [shape: f32[2,16,384], index: 1, kind: input, shape index: {}]
  %s2 = inlined_call_operand.vmem [shape: f32[2,256,1], index: 2, kind: input, shape index: {}]
  %s3 = inlined_call_operand.vmem [shape: f32[2,1,384], index: 3, kind: input, shape index: {}]
  %s4 = inlined_call_operand.hbm [shape: f32[2,256,384], index: 4, kind: output, shape index: {}]
  %s5 = sld [smem:[#allocation0]]
  $region49: #{tpu_custom_call.1} parent=0
    _
  %s7 = ssub.s32 1, %s5
  %s8 = scalar_select 0, %s7, %s5
  $region1: #{tpu_custom_call.1} parent=0
    #allocation2 [shape = 'u8[786432]{0}', space=vmem, size = 0xc0000, scoped, tag = 'output window, operand 0']
    #allocation3 [shape = 's32[2]{0}', space=sflag, size = 0x8, scoped, tag = 'scoped memory for tpu_custom_call.1']
    %9 = vsyncpa [#allocation3], 0
    %s10 = scalar_lea.sflag [#allocation3], 1
    %11 = vsyncpa %s10, 0
    loop: start=0, step=1, limit=4
    $region2: #{tpu_custom_call.1} parent=1 // loop_pre_header
      _
    $region3: #{tpu_custom_call.1} parent=1 // loop_header
      %s13 = sphi 0, %s17
      %p14 = scmp.ge.s32.totalorder %s13, 4
      %s20 = sphi 0, %s39
      %s21 = sphi 0, %s35
      %s22 = sphi 0, %s31
      %s23 = sphi 0, %s20
      %s24 = sphi 0, %s21
      %s25 = sphi 0, %s22
      %s26 = sphi 0, %s23
      %s27 = sphi 0, %s24
      %s28 = sphi 0, %s25
      %s44 = sphi 0, %s46
      %s47 = sphi 0, %s44
      %s48 = sphi 0, %s47
      %s64 = sphi 0, %s48
      %s72 = sphi 0, %s74
      %s75 = sphi 0, %s72
      %s76 = sphi 0, %s75
      %s92 = sphi 0, %s76
      %s100 = sphi 0, %s102
      %s103 = sphi 0, %s100
      %s104 = sphi 0, %s103
      %s120 = sphi 0, %s104
      %s128 = sphi 0, %s130
      %s131 = sphi 0, %s128
      %s132 = sphi 0, %s131
      %s148 = sphi 0, %s132
      %s158 = sphi 0, %s160
      %s161 = sphi 0, %s158
      %s162 = sphi 0, %s161
      %s178 = sphi 0, %s162
    $region4: #{tpu_custom_call.1} parent=1 // loop_header_branch
      %16 = sbr.rel (%p14) target = $region8
    $region5: #{tpu_custom_call.1} parent=1 // loop_body
      %s18 = ssub.s32 %s13, 1
      %s19 = ssub.s32 %s13, 2
      %s29 = sadd.s32 1, %s22
      %p30 = scmp.ge.s32.totalorder %s29, 1
      %s31 = scalar_select %p30, 0, %s29
      %s32 = sadd.s32 1, %s21
      %s33 = scalar_select %p30, %s32, %s21
      %p34 = scmp.ge.s32.totalorder %s33, 1
      %s35 = scalar_select %p34, 0, %s33
      %s36 = sadd.s32 1, %s20
      %s37 = scalar_select %p34, %s36, %s20
      %p38 = scmp.ge.s32.totalorder %s37, 2
      %s39 = scalar_select %p38, 0, %s37
      %s40 = ssub.s32 %s20, %s39
      %s41 = ssub.s32 %s21, %s35
      %s42 = sor.u32 %s40, %s41
      %p43 = scmp.eq.s32.totalorder %s42, 0
      %s45 = sadd.s32 %s44, 1
      %s46 = scalar_select %p43, %s44, %s45
      %p49 = pneg %p43
      %p50 = scmp.eq.s32.totalorder %s13, 1
      %p51 = por %p49, %p50
      %p52 = scmp.ne.s32.totalorder %s44, %s47
      %p53 = scmp.eq.s32.totalorder %s13, 0
      %p54 = por %p52, %p53
      %p55 = scmp.ne.s32.totalorder %s44, %s47
      %p56 = scmp.eq.s32.totalorder %s18, 1
      %p57 = por %p55, %p56
      %p58 = scmp.ne.s32.totalorder %s47, %s48
      %p59 = scmp.eq.s32.totalorder %s18, 0
      %p60 = por %p58, %p59
      %p61 = scmp.ne.s32.totalorder %s47, %s48
      %p62 = scmp.eq.s32.totalorder %s19, 1
      %p63 = por %p61, %p62
      %p65 = scmp.ne.s32.totalorder %s48, %s64
      %p66 = scmp.eq.s32.totalorder %s19, 0
      %p67 = por %p65, %p66
      %s68 = ssub.s32 %s20, %s39
      %s69 = ssub.s32 %s22, %s31
      %s70 = sor.u32 %s68, %s69
      %p71 = scmp.eq.s32.totalorder %s70, 0
      %s73 = sadd.s32 %s72, 1
      %s74 = scalar_select %p71, %s72, %s73
      %p77 = pneg %p71
      %p78 = scmp.eq.s32.totalorder %s13, 1
      %p79 = por %p77, %p78
      %p80 = scmp.ne.s32.totalorder %s72, %s75
      %p81 = scmp.eq.s32.totalorder %s13, 0
      %p82 = por %p80, %p81
      %p83 = scmp.ne.s32.totalorder %s72, %s75
      %p84 = scmp.eq.s32.totalorder %s18, 1
      %p85 = por %p83, %p84
      %p86 = scmp.ne.s32.totalorder %s75, %s76
      %p87 = scmp.eq.s32.totalorder %s18, 0
      %p88 = por %p86, %p87
      %p89 = scmp.ne.s32.totalorder %s75, %s76
      %p90 = scmp.eq.s32.totalorder %s19, 1
      %p91 = por %p89, %p90
      %p93 = scmp.ne.s32.totalorder %s76, %s92
      %p94 = scmp.eq.s32.totalorder %s19, 0
      %p95 = por %p93, %p94
      %s96 = ssub.s32 %s20, %s39
      %s97 = ssub.s32 %s21, %s35
      %s98 = sor.u32 %s96, %s97
      %p99 = scmp.eq.s32.totalorder %s98, 0
      %s101 = sadd.s32 %s100, 1
      %s102 = scalar_select %p99, %s100, %s101
      %p105 = pneg %p99
      %p106 = scmp.eq.s32.totalorder %s13, 1
      %p107 = por %p105, %p106
      %p108 = scmp.ne.s32.totalorder %s100, %s103
      %p109 = scmp.eq.s32.totalorder %s13, 0
      %p110 = por %p108, %p109
      %p111 = scmp.ne.s32.totalorder %s100, %s103
      %p112 = scmp.eq.s32.totalorder %s18, 1
      %p113 = por %p111, %p112
      %p114 = scmp.ne.s32.totalorder %s103, %s104
      %p115 = scmp.eq.s32.totalorder %s18, 0
      %p116 = por %p114, %p115
      %p117 = scmp.ne.s32.totalorder %s103, %s104
      %p118 = scmp.eq.s32.totalorder %s19, 1
      %p119 = por %p117, %p118
      %p121 = scmp.ne.s32.totalorder %s104, %s120
      %p122 = scmp.eq.s32.totalorder %s19, 0
      %p123 = por %p121, %p122
      %s124 = ssub.s32 %s20, %s39
      %s125 = ssub.s32 %s22, %s31
      %s126 = sor.u32 %s124, %s125
      %p127 = scmp.eq.s32.totalorder %s126, 0
      %s129 = sadd.s32 %s128, 1
      %s130 = scalar_select %p127, %s128, %s129
      %p133 = pneg %p127
      %p134 = scmp.eq.s32.totalorder %s13, 1
      %p135 = por %p133, %p134
      %p136 = scmp.ne.s32.totalorder %s128, %s131
      %p137 = scmp.eq.s32.totalorder %s13, 0
      %p138 = por %p136, %p137
      %p139 = scmp.ne.s32.totalorder %s128, %s131
      %p140 = scmp.eq.s32.totalorder %s18, 1
      %p141 = por %p139, %p140
      %p142 = scmp.ne.s32.totalorder %s131, %s132
      %p143 = scmp.eq.s32.totalorder %s18, 0
      %p144 = por %p142, %p143
      %p145 = scmp.ne.s32.totalorder %s131, %s132
      %p146 = scmp.eq.s32.totalorder %s19, 1
      %p147 = por %p145, %p146
      %p149 = scmp.ne.s32.totalorder %s132, %s148
      %p150 = scmp.eq.s32.totalorder %s19, 0
      %p151 = por %p149, %p150
      %s152 = ssub.s32 %s20, %s39
      %s153 = ssub.s32 %s21, %s35
      %s154 = sor.u32 %s152, %s153
      %s155 = ssub.s32 %s22, %s31
      %s156 = sor.u32 %s154, %s155
      %p157 = scmp.eq.s32.totalorder %s156, 0
      %s159 = sadd.s32 %s158, 1
      %s160 = scalar_select %p157, %s158, %s159
      %p163 = pneg %p157
      %p164 = scmp.eq.s32.totalorder %s13, 1
      %p165 = por %p163, %p164
      %p166 = scmp.ne.s32.totalorder %s158, %s161
      %p167 = scmp.eq.s32.totalorder %s13, 0
      %p168 = por %p166, %p167
      %p169 = scmp.ne.s32.totalorder %s158, %s161
      %p170 = scmp.eq.s32.totalorder %s18, 1
      %p171 = por %p169, %p170
      %p172 = scmp.ne.s32.totalorder %s161, %s162
      %p173 = scmp.eq.s32.totalorder %s18, 0
      %p174 = por %p172, %p173
      %p175 = scmp.ne.s32.totalorder %s161, %s162
      %p176 = scmp.eq.s32.totalorder %s19, 1
      %p177 = por %p175, %p176
      %p179 = scmp.ne.s32.totalorder %s162, %s178
      %p180 = scmp.eq.s32.totalorder %s19, 0
      %p181 = por %p179, %p180
      %p182 = scmp.le.s32.totalorder 1, %s13
      %p183 = scmp.lt.s32.totalorder %s13, 3
      %p184 = pnand %p182, %p183
      %p185 = pneg %p184
      // Predicated region
      $region9: #{tpu_custom_call.1} parent=5 // pred_check
        _
      $region10: #{tpu_custom_call.1} parent=5 // pred_check_branch
        %187 = sbr.rel (%p184) target = $region12
      $region11: #{tpu_custom_call.1} parent=5 // pred_region
        %s188 = ssub.s32 %s13, 1
      $region12: #{tpu_custom_call.1} parent=5 // pred_fallthru
        _
      %p189 = scmp.lt.s32.totalorder %s13, 2
      // Predicated region
      $region13: #{tpu_custom_call.1} parent=5 // pred_check
        %p190 = pneg %p189
      $region14: #{tpu_custom_call.1} parent=5 // pred_check_branch
        %192 = sbr.rel (%p190) target = $region16
      $region15: #{tpu_custom_call.1} parent=5 // pred_region
        // Predicated region
        $region17: #{tpu_custom_call.1} parent=15 // pred_check
          %p193 = pneg %p54
        $region18: #{tpu_custom_call.1} parent=15 // pred_check_branch
          %195 = sbr.rel (%p193) target = $region20
        $region19: #{tpu_custom_call.1} parent=15 // pred_region
          %s196 = smul.u32 32, %s21
          %p197 = scmp.lt.s32.totalorder %s20, 1
          %s198 = scalar_select %p197, %s20, 1
          %p199 = scmp.lt.s32.totalorder %s196, 31
          %s200 = scalar_select %p199, %s196, 31
          %s201 = smul.addr %s198, 32
          %s202 = sadd.s32 %s200, %s201
          %s203 = smul.addr %s202, 8
          %s204 = scalar_lea.vmem %s0, %s203
          %s205 = smul.u32 32, %s21
        $region20: #{tpu_custom_call.1} parent=15 // pred_fallthru
          _
        // Predicated region
        $region21: #{tpu_custom_call.1} parent=15 // pred_check
          %p206 = pneg %p82
        $region22: #{tpu_custom_call.1} parent=15 // pred_check_branch
          %208 = sbr.rel (%p206) target = $region24
        $region23: #{tpu_custom_call.1} parent=15 // pred_region
          %s209 = smul.u32 3, %s22
          %p210 = scmp.lt.s32.totalorder %s20, 1
          %s211 = scalar_select %p210, %s20, 1
          %p212 = scmp.lt.s32.totalorder %s209, 2
          %s213 = scalar_select %p212, %s209, 2
          %s214 = smul.addr %s211, 6
          %s215 = sadd.s32 %s213, %s214
          %s216 = smul.addr %s215, 8
          %s217 = scalar_lea.vmem %s1, %s216
          %s218 = smul.u32 3, %s22
        $region24: #{tpu_custom_call.1} parent=15 // pred_fallthru
          _
        // Predicated region
        $region25: #{tpu_custom_call.1} parent=15 // pred_check
          %p219 = pneg %p110
        $region26: #{tpu_custom_call.1} parent=15 // pred_check_branch
          %221 = sbr.rel (%p219) target = $region28
        $region27: #{tpu_custom_call.1} parent=15 // pred_region
          %s222 = smul.u32 32, %s21
          %p223 = scmp.lt.s32.totalorder %s20, 1
          %s224 = scalar_select %p223, %s20, 1
          %p225 = scmp.lt.s32.totalorder %s222, 31
          %s226 = scalar_select %p225, %s222, 31
          %s227 = smul.addr %s224, 32
          %s228 = sadd.s32 %s226, %s227
          %s229 = smul.addr %s228, 8
          %s230 = scalar_lea.vmem %s2, %s229
          %s231 = smul.u32 32, %s21
        $region28: #{tpu_custom_call.1} parent=15 // pred_fallthru
          _
        // Predicated region
        $region29: #{tpu_custom_call.1} parent=15 // pred_check
          %p232 = pneg %p138
        $region30: #{tpu_custom_call.1} parent=15 // pred_check_branch
          %234 = sbr.rel (%p232) target = $region32
        $region31: #{tpu_custom_call.1} parent=15 // pred_region
          %s235 = smul.u32 3, %s22
          %p236 = scmp.lt.s32.totalorder %s20, 1
          %s237 = scalar_select %p236, %s20, 1
          %p238 = scmp.lt.s32.totalorder %s235, 2
          %s239 = scalar_select %p238, %s235, 2
          %s240 = smul.addr %s237, 3
          %s241 = sadd.s32 %s239, %s240
          %s242 = scalar_lea.vmem %s3, %s241
          %s243 = smul.u32 3, %s22
        $region32: #{tpu_custom_call.1} parent=15 // pred_fallthru
          _
      $region16: #{tpu_custom_call.1} parent=5 // pred_fallthru
        _
      %p244 = scmp.le.s32.totalorder 1, %s13
      %p245 = scmp.lt.s32.totalorder %s13, 3
      %p246 = pnand %p244, %p245
      %p247 = pneg %p246
      // Predicated region
      $region33: #{tpu_custom_call.1} parent=5 // pred_check
        _
      $region34: #{tpu_custom_call.1} parent=5 // pred_check_branch
        %249 = sbr.rel (%p246) target = $region36
      $region35: #{tpu_custom_call.1} parent=5 // pred_region
        %s250 = ssub.s32 %s13, 1
        %s251 = smul.u32 32, %s24
        %p252 = scmp.lt.s32.totalorder %s23, 1
        %s253 = scalar_select %p252, %s23, 1
        %p254 = scmp.lt.s32.totalorder %s251, 31
        %s255 = scalar_select %p254, %s251, 31
        %s256 = smul.addr %s253, 32
        %s257 = sadd.s32 %s255, %s256
        %s258 = smul.addr %s257, 8
        %s259 = scalar_lea.vmem %s0, %s258
        %p260 = pneg %p60
        %p261 = pneg %p57
        %s262 = smul.u32 3, %s25
        %p263 = scmp.lt.s32.totalorder %s23, 1
        %s264 = scalar_select %p263, %s23, 1
        %p265 = scmp.lt.s32.totalorder %s262, 2
        %s266 = scalar_select %p265, %s262, 2
        %s267 = smul.addr %s264, 6
        %s268 = sadd.s32 %s266, %s267
        %s269 = smul.addr %s268, 8
        %s270 = scalar_lea.vmem %s1, %s269
        %p271 = pneg %p88
        %p272 = pneg %p85
        %s273 = smul.u32 32, %s24
        %p274 = scmp.lt.s32.totalorder %s23, 1
        %s275 = scalar_select %p274, %s23, 1
        %p276 = scmp.lt.s32.totalorder %s273, 31
        %s277 = scalar_select %p276, %s273, 31
        %s278 = smul.addr %s275, 32
        %s279 = sadd.s32 %s277, %s278
        %s280 = smul.addr %s279, 8
        %s281 = scalar_lea.vmem %s2, %s280
        %p282 = pneg %p116
        %p283 = pneg %p113
        %s284 = smul.u32 3, %s25
        %p285 = scmp.lt.s32.totalorder %s23, 1
        %s286 = scalar_select %p285, %s23, 1
        %p287 = scmp.lt.s32.totalorder %s284, 2
        %s288 = scalar_select %p287, %s284, 2
        %s289 = smul.addr %s286, 3
        %s290 = sadd.s32 %s288, %s289
        %s291 = scalar_lea.vmem %s3, %s290
        %p292 = pneg %p144
        %p293 = pneg %p141
        %p294 = pneg %p174
        %p295 = pneg %p171
        %s296 = sand.u32 %s161, 1
        %s297 = scalar_lea.sflag [#allocation3], %s296
        %s298 = sand.u32 %s161, 1
        %s299 = smul.addr %s298, 768
        %s300 = scalar_lea.vmem [#allocation2], %s299
        %s301 = smul.u32 32, %s24
        %p302 = scmp.lt.s32.totalorder %s23, 1
        %s303 = scalar_select %p302, %s23, 1
        %p304 = scmp.lt.s32.totalorder %s301, 31
        %s305 = scalar_select %p304, %s301, 31
        %s306 = smul.addr %s303, 32
        %s307 = sadd.s32 %s305, %s306
        %s308 = smul.addr %s307, 8
        %s309 = scalar_lea.vmem %s0, %s308
        %s310 = smul.u32 32, %s24
        %s311 = smul.u32 3, %s25
        %p312 = scmp.lt.s32.totalorder %s23, 1
        %s313 = scalar_select %p312, %s23, 1
        %p314 = scmp.lt.s32.totalorder %s311, 2
        %s315 = scalar_select %p314, %s311, 2
        %s316 = smul.addr %s313, 6
        %s317 = sadd.s32 %s315, %s316
        %s318 = smul.addr %s317, 8
        %s319 = scalar_lea.vmem %s1, %s318
        %s320 = smul.u32 3, %s25
        %s321 = smul.u32 32, %s24
        %p322 = scmp.lt.s32.totalorder %s23, 1
        %s323 = scalar_select %p322, %s23, 1
        %p324 = scmp.lt.s32.totalorder %s321, 31
        %s325 = scalar_select %p324, %s321, 31
        %s326 = smul.addr %s323, 32
        %s327 = sadd.s32 %s325, %s326
        %s328 = smul.addr %s327, 8
        %s329 = scalar_lea.vmem %s2, %s328
        %s330 = smul.u32 32, %s24
        %s331 = smul.u32 3, %s25
        %p332 = scmp.lt.s32.totalorder %s23, 1
        %s333 = scalar_select %p332, %s23, 1
        %p334 = scmp.lt.s32.totalorder %s331, 2
        %s335 = scalar_select %p334, %s331, 2
        %s336 = smul.addr %s333, 3
        %s337 = sadd.s32 %s335, %s336
        %s338 = scalar_lea.vmem %s3, %s337
        %s339 = smul.u32 3, %s25
        %s340 = smul.u32 32, %s24
        %s341 = smul.u32 3, %s25
        %v342 = vld [vmem:[%s309] sm:$0xff]
        %v343 = vld [vmem:[%s309 + $0x8] sm:$0xff]
        %v344 = vld [vmem:[%s309 + $0x10] sm:$0xff]
        %v345 = vld [vmem:[%s309 + $0x18] sm:$0xff]
        %v346 = vld [vmem:[%s309 + $0x20] sm:$0xff]
        %v347 = vld [vmem:[%s309 + $0x28] sm:$0xff]
        %v348 = vld [vmem:[%s309 + $0x30] sm:$0xff]
        %v349 = vld [vmem:[%s309 + $0x38] sm:$0xff]
        %v350 = vld [vmem:[%s309 + $0x40] sm:$0xff]
        %v351 = vld [vmem:[%s309 + $0x48] sm:$0xff]
        %v352 = vld [vmem:[%s309 + $0x50] sm:$0xff]
        %v353 = vld [vmem:[%s309 + $0x58] sm:$0xff]
        %v354 = vld [vmem:[%s309 + $0x60] sm:$0xff]
        %v355 = vld [vmem:[%s309 + $0x68] sm:$0xff]
        %v356 = vld [vmem:[%s309 + $0x70] sm:$0xff]
        %v357 = vld [vmem:[%s309 + $0x78] sm:$0xff]
        %v358 = vld [vmem:[%s309 + $0x80] sm:$0xff]
        %v359 = vld [vmem:[%s309 + $0x88] sm:$0xff]
        %v360 = vld [vmem:[%s309 + $0x90] sm:$0xff]
        %v361 = vld [vmem:[%s309 + $0x98] sm:$0xff]
        %v362 = vld [vmem:[%s309 + $0xa0] sm:$0xff]
        %v363 = vld [vmem:[%s309 + $0xa8] sm:$0xff]
        %v364 = vld [vmem:[%s309 + $0xb0] sm:$0xff]
        %v365 = vld [vmem:[%s309 + $0xb8] sm:$0xff]
        %v366 = vld [vmem:[%s309 + $0xc0] sm:$0xff]
        %v367 = vld [vmem:[%s309 + $0xc8] sm:$0xff]
        %v368 = vld [vmem:[%s309 + $0xd0] sm:$0xff]
        %v369 = vld [vmem:[%s309 + $0xd8] sm:$0xff]
        %v370 = vld [vmem:[%s309 + $0xe0] sm:$0xff]
        %v371 = vld [vmem:[%s309 + $0xe8] sm:$0xff]
        %v372 = vld [vmem:[%s309 + $0xf0] sm:$0xff]
        %v373 = vld [vmem:[%s309 + $0xf8] sm:$0xff]
        %v374 = vld [vmem:[%s319] sm:$0xff]
        %v375 = vld [vmem:[%s319 + $0x8] sm:$0xff]
        %v376 = vld [vmem:[%s319 + $0x10] sm:$0xff]
        %v377 = vld [vmem:[%s319 + $0x18] sm:$0xff]
        %v378 = vld [vmem:[%s319 + $0x20] sm:$0xff]
        %v379 = vld [vmem:[%s319 + $0x28] sm:$0xff]
        %vm380 = vcmask 130048
        %v382 = vsel %vm380, %v342, 0
        %v385 = vsel %vm380, %v343, 0
        %v388 = vsel %vm380, %v344, 0
        %v391 = vsel %vm380, %v345, 0
        %v394 = vsel %vm380, %v346, 0
        %v397 = vsel %vm380, %v347, 0
        %v400 = vsel %vm380, %v348, 0
        %v403 = vsel %vm380, %v349, 0
        %v406 = vsel %vm380, %v350, 0
        %v409 = vsel %vm380, %v351, 0
        %v412 = vsel %vm380, %v352, 0
        %v415 = vsel %vm380, %v353, 0
        %v418 = vsel %vm380, %v354, 0
        %v421 = vsel %vm380, %v355, 0
        %v424 = vsel %vm380, %v356, 0
        %v427 = vsel %vm380, %v357, 0
        %v430 = vsel %vm380, %v358, 0
        %v433 = vsel %vm380, %v359, 0
        %v436 = vsel %vm380, %v360, 0
        %v439 = vsel %vm380, %v361, 0
        %v442 = vsel %vm380, %v362, 0
        %v445 = vsel %vm380, %v363, 0
        %v448 = vsel %vm380, %v364, 0
        %v451 = vsel %vm380, %v365, 0
        %v454 = vsel %vm380, %v366, 0
        %v457 = vsel %vm380, %v367, 0
        %v460 = vsel %vm380, %v368, 0
        %v463 = vsel %vm380, %v369, 0
        %v466 = vsel %vm380, %v370, 0
        %v469 = vsel %vm380, %v371, 0
        %v472 = vsel %vm380, %v372, 0
        %v475 = vsel %vm380, %v373, 0
        %477 = vmatprep.subr.mxu0 0.0
        %478 = vmatpush1.msra.mxu0 0.0
        %479 = vmatprep.subr.mxu0 0.0
        %480 = vmatpush1.msra.mxu0 0.0
        %481 = vmatprep.subr.mxu0 0.0
        %482 = vmatpush1.msra.mxu0 0.0
        %483 = vmatprep.subr.mxu0 0.0
        %484 = vmatpush1.msra.mxu0 0.0
        %485 = vmatprep.subr.mxu0 0.0
        %486 = vmatpush1.msra.mxu0 0.0
        %487 = vmatprep.subr.mxu0 0.0
        %488 = vmatpush1.msra.mxu0 0.0
        %489 = vmatprep.subr.mxu0 0.0
        %490 = vmatpush1.msra.mxu0 0.0
        %491 = vmatprep.subr.mxu0 0.0
        %492 = vmatpush1.msra.mxu0 0.0
        %493 = vmatprep.subr.mxu0 0.0
        %494 = vmatpush1.msra.mxu0 0.0
        %495 = vmatprep.subr.mxu0 0.0
        %496 = vmatpush1.msra.mxu0 0.0
        %497 = vmatprep.subr.mxu0 0.0
        %498 = vmatpush1.msra.mxu0 0.0
        %499 = vmatprep.subr.mxu0 0.0
        %500 = vmatpush1.msra.mxu0 0.0
        %501 = vmatprep.subr.mxu0 0.0
        %502 = vmatpush1.msra.mxu0 0.0
        %503 = vmatprep.subr.mxu0 0.0
        %504 = vmatpush1.msra.mxu0 0.0
        %505 = vmatprep.subr.mxu0 %v378
        %506 = vmatpush1.msra.mxu0 %v377
        %507 = vmatprep.subr.mxu0 %v375
        %508 = vmatpush1.msra.mxu0 %v374
        %509 = vmatprep.subr.mxu0 0.0
        %510 = vmatpush2.msra.mxu0 0.0
        %511 = vmatprep.subr.mxu0 0.0
        %512 = vmatpush2.msra.mxu0 0.0
        %513 = vmatprep.subr.mxu0 0.0
        %514 = vmatpush2.msra.mxu0 0.0
        %515 = vmatprep.subr.mxu0 0.0
        %516 = vmatpush2.msra.mxu0 0.0
        %517 = vmatprep.subr.mxu0 0.0
        %518 = vmatpush2.msra.mxu0 0.0
        %519 = vmatprep.subr.mxu0 0.0
        %520 = vmatpush2.msra.mxu0 0.0
        %521 = vmatprep.subr.mxu0 0.0
        %522 = vmatpush2.msra.mxu0 0.0
        %523 = vmatprep.subr.mxu0 0.0
        %524 = vmatpush2.msra.mxu0 0.0
        %525 = vmatprep.subr.mxu0 0.0
        %526 = vmatpush2.msra.mxu0 0.0
        %527 = vmatprep.subr.mxu0 0.0
        %528 = vmatpush2.msra.mxu0 0.0
        %529 = vmatprep.subr.mxu0 0.0
        %530 = vmatpush2.msra.mxu0 0.0
        %531 = vmatprep.subr.mxu0 0.0
        %532 = vmatpush2.msra.mxu0 0.0
        %533 = vmatprep.subr.mxu0 0.0
        %534 = vmatpush2.msra.mxu0 0.0
        %535 = vmatprep.subr.mxu0 0.0
        %536 = vmatpush2.msra.mxu0 0.0
        %537 = vmatprep.subr.mxu0 0.0
        %538 = vmatpush2.msra.mxu0 0.0
        %539 = vmatprep.subr.mxu0 0.0
        %540 = vmatpush2.msra.mxu0 0.0
        %541 = vmatprep.mubr.f32.mxu0 0.0
        %542 = vmatmul.mubr.f32.gmra.mxu0 %v382
        %v543 = vpop.f32.mrf.mxu0
        %v544 = vadd.f32 0.0, %v543
        %v545 = vpop.f32.mrf.mxu0
        %v546 = vadd.f32 0.0, %v545
        %547 = vmatprep.mubr.f32.mxu0 0.0
        %548 = vmatmul.mubr.f32.gmra.mxu0 %v385
        %v549 = vpop.f32.mrf.mxu0
        %v550 = vadd.f32 0.0, %v549
        %v551 = vpop.f32.mrf.mxu0
        %v552 = vadd.f32 0.0, %v551
        %553 = vmatprep.mubr.f32.mxu0 0.0
        %554 = vmatmul.mubr.f32.gmra.mxu0 %v388
        %v555 = vpop.f32.mrf.mxu0
        %v556 = vadd.f32 0.0, %v555
        %v557 = vpop.f32.mrf.mxu0
        %v558 = vadd.f32 0.0, %v557
        %559 = vmatprep.mubr.f32.mxu0 0.0
        %560 = vmatmul.mubr.f32.gmra.mxu0 %v391
        %v561 = vpop.f32.mrf.mxu0
        %v562 = vadd.f32 0.0, %v561
        %v563 = vpop.f32.mrf.mxu0
        %v564 = vadd.f32 0.0, %v563
        %565 = vmatprep.mubr.f32.mxu0 0.0
        %566 = vmatmul.mubr.f32.gmra.mxu0 %v394
        %v567 = vpop.f32.mrf.mxu0
        %v568 = vadd.f32 0.0, %v567
        %v569 = vpop.f32.mrf.mxu0
        %v570 = vadd.f32 0.0, %v569
        %571 = vmatprep.mubr.f32.mxu0 0.0
        %572 = vmatmul.mubr.f32.gmra.mxu0 %v397
        %v573 = vpop.f32.mrf.mxu0
        %v574 = vadd.f32 0.0, %v573
        %v575 = vpop.f32.mrf.mxu0
        %v576 = vadd.f32 0.0, %v575
        %577 = vmatprep.mubr.f32.mxu0 0.0
        %578 = vmatmul.mubr.f32.gmra.mxu0 %v400
        %v579 = vpop.f32.mrf.mxu0
        %v580 = vadd.f32 0.0, %v579
        %v581 = vpop.f32.mrf.mxu0
        %v582 = vadd.f32 0.0, %v581
        %583 = vmatprep.mubr.f32.mxu0 0.0
        %584 = vmatmul.mubr.f32.gmra.mxu0 %v403
        %v585 = vpop.f32.mrf.mxu0
        %v586 = vadd.f32 0.0, %v585
        %v587 = vpop.f32.mrf.mxu0
        %v588 = vadd.f32 0.0, %v587
        %589 = vmatprep.mubr.f32.mxu0 0.0
        %590 = vmatmul.mubr.f32.gmra.mxu0 %v406
        %v591 = vpop.f32.mrf.mxu0
        %v592 = vadd.f32 0.0, %v591
        %v593 = vpop.f32.mrf.mxu0
        %v594 = vadd.f32 0.0, %v593
        %595 = vmatprep.mubr.f32.mxu0 0.0
        %596 = vmatmul.mubr.f32.gmra.mxu0 %v409
        %v597 = vpop.f32.mrf.mxu0
        %v598 = vadd.f32 0.0, %v597
        %v599 = vpop.f32.mrf.mxu0
        %v600 = vadd.f32 0.0, %v599
        %601 = vmatprep.mubr.f32.mxu0 0.0
        %602 = vmatmul.mubr.f32.gmra.mxu0 %v412
        %v603 = vpop.f32.mrf.mxu0
        %v604 = vadd.f32 0.0, %v603
        %v605 = vpop.f32.mrf.mxu0
        %v606 = vadd.f32 0.0, %v605
        %607 = vmatprep.mubr.f32.mxu0 0.0
        %608 = vmatmul.mubr.f32.gmra.mxu0 %v415
        %v609 = vpop.f32.mrf.mxu0
        %v610 = vadd.f32 0.0, %v609
        %v611 = vpop.f32.mrf.mxu0
        %v612 = vadd.f32 0.0, %v611
        %613 = vmatprep.mubr.f32.mxu0 0.0
        %614 = vmatmul.mubr.f32.gmra.mxu0 %v418
        %v615 = vpop.f32.mrf.mxu0
        %v616 = vadd.f32 0.0, %v615
        %v617 = vpop.f32.mrf.mxu0
        %v618 = vadd.f32 0.0, %v617
        %619 = vmatprep.mubr.f32.mxu0 0.0
        %620 = vmatmul.mubr.f32.gmra.mxu0 %v421
        %v621 = vpop.f32.mrf.mxu0
        %v622 = vadd.f32 0.0, %v621
        %v623 = vpop.f32.mrf.mxu0
        %v624 = vadd.f32 0.0, %v623
        %625 = vmatprep.mubr.f32.mxu0 0.0
        %626 = vmatmul.mubr.f32.gmra.mxu0 %v424
        %v627 = vpop.f32.mrf.mxu0
        %v628 = vadd.f32 0.0, %v627
        %v629 = vpop.f32.mrf.mxu0
        %v630 = vadd.f32 0.0, %v629
        %631 = vmatprep.mubr.f32.mxu0 0.0
        %632 = vmatmul.mubr.f32.gmra.mxu0 %v427
        %v633 = vpop.f32.mrf.mxu0
        %v634 = vadd.f32 0.0, %v633
        %v635 = vpop.f32.mrf.mxu0
        %v636 = vadd.f32 0.0, %v635
        %637 = vmatprep.mubr.f32.mxu0 0.0
        %638 = vmatmul.mubr.f32.gmra.mxu0 %v430
        %v639 = vpop.f32.mrf.mxu0
        %v640 = vadd.f32 0.0, %v639
        %v641 = vpop.f32.mrf.mxu0
        %v642 = vadd.f32 0.0, %v641
        %643 = vmatprep.mubr.f32.mxu0 0.0
        %644 = vmatmul.mubr.f32.gmra.mxu0 %v433
        %v645 = vpop.f32.mrf.mxu0
        %v646 = vadd.f32 0.0, %v645
        %v647 = vpop.f32.mrf.mxu0
        %v648 = vadd.f32 0.0, %v647
        %649 = vmatprep.mubr.f32.mxu0 0.0
        %650 = vmatmul.mubr.f32.gmra.mxu0 %v436
        %v651 = vpop.f32.mrf.mxu0
        %v652 = vadd.f32 0.0, %v651
        %v653 = vpop.f32.mrf.mxu0
        %v654 = vadd.f32 0.0, %v653
        %655 = vmatprep.mubr.f32.mxu0 0.0
        %656 = vmatmul.mubr.f32.gmra.mxu0 %v439
        %v657 = vpop.f32.mrf.mxu0
        %v658 = vadd.f32 0.0, %v657
        %v659 = vpop.f32.mrf.mxu0
        %v660 = vadd.f32 0.0, %v659
        %661 = vmatprep.mubr.f32.mxu0 0.0
        %662 = vmatmul.mubr.f32.gmra.mxu0 %v442
        %v663 = vpop.f32.mrf.mxu0
        %v664 = vadd.f32 0.0, %v663
        %v665 = vpop.f32.mrf.mxu0
        %v666 = vadd.f32 0.0, %v665
        %667 = vmatprep.mubr.f32.mxu0 0.0
        %668 = vmatmul.mubr.f32.gmra.mxu0 %v445
        %v669 = vpop.f32.mrf.mxu0
        %v670 = vadd.f32 0.0, %v669
        %v671 = vpop.f32.mrf.mxu0
        %v672 = vadd.f32 0.0, %v671
        %673 = vmatprep.mubr.f32.mxu0 0.0
        %674 = vmatmul.mubr.f32.gmra.mxu0 %v448
        %v675 = vpop.f32.mrf.mxu0
        %v676 = vadd.f32 0.0, %v675
        %v677 = vpop.f32.mrf.mxu0
        %v678 = vadd.f32 0.0, %v677
        %679 = vmatprep.mubr.f32.mxu0 0.0
        %680 = vmatmul.mubr.f32.gmra.mxu0 %v451
        %v681 = vpop.f32.mrf.mxu0
        %v682 = vadd.f32 0.0, %v681
        %v683 = vpop.f32.mrf.mxu0
        %v684 = vadd.f32 0.0, %v683
        %685 = vmatprep.mubr.f32.mxu0 0.0
        %686 = vmatmul.mubr.f32.gmra.mxu0 %v454
        %v687 = vpop.f32.mrf.mxu0
        %v688 = vadd.f32 0.0, %v687
        %v689 = vpop.f32.mrf.mxu0
        %v690 = vadd.f32 0.0, %v689
        %691 = vmatprep.mubr.f32.mxu0 0.0
        %692 = vmatmul.mubr.f32.gmra.mxu0 %v457
        %v693 = vpop.f32.mrf.mxu0
        %v694 = vadd.f32 0.0, %v693
        %v695 = vpop.f32.mrf.mxu0
        %v696 = vadd.f32 0.0, %v695
        %697 = vmatprep.mubr.f32.mxu0 0.0
        %698 = vmatmul.mubr.f32.gmra.mxu0 %v460
        %v699 = vpop.f32.mrf.mxu0
        %v700 = vadd.f32 0.0, %v699
        %v701 = vpop.f32.mrf.mxu0
        %v702 = vadd.f32 0.0, %v701
        %703 = vmatprep.mubr.f32.mxu0 0.0
        %704 = vmatmul.mubr.f32.gmra.mxu0 %v463
        %v705 = vpop.f32.mrf.mxu0
        %v706 = vadd.f32 0.0, %v705
        %v707 = vpop.f32.mrf.mxu0
        %v708 = vadd.f32 0.0, %v707
        %709 = vmatprep.mubr.f32.mxu0 0.0
        %710 = vmatmul.mubr.f32.gmra.mxu0 %v466
        %v711 = vpop.f32.mrf.mxu0
        %v712 = vadd.f32 0.0, %v711
        %v713 = vpop.f32.mrf.mxu0
        %v714 = vadd.f32 0.0, %v713
        %715 = vmatprep.mubr.f32.mxu0 0.0
        %716 = vmatmul.mubr.f32.gmra.mxu0 %v469
        %v717 = vpop.f32.mrf.mxu0
        %v718 = vadd.f32 0.0, %v717
        %v719 = vpop.f32.mrf.mxu0
        %v720 = vadd.f32 0.0, %v719
        %721 = vmatprep.mubr.f32.mxu0 0.0
        %722 = vmatmul.mubr.f32.gmra.mxu0 %v472
        %v723 = vpop.f32.mrf.mxu0
        %v724 = vadd.f32 0.0, %v723
        %v725 = vpop.f32.mrf.mxu0
        %v726 = vadd.f32 0.0, %v725
        %727 = vmatprep.mubr.f32.mxu0 0.0
        %728 = vmatmul.mubr.f32.gmra.mxu0 %v475
        %v729 = vpop.f32.mrf.mxu0
        %v730 = vadd.f32 0.0, %v729
        %v731 = vpop.f32.mrf.mxu0
        %v732 = vadd.f32 0.0, %v731
        %733 = vdwg.mxu0
        %734 = vmatprep.subr.mxu0 0.0
        %735 = vmatpush1.msra.mxu0 0.0
        %736 = vmatprep.subr.mxu0 0.0
        %737 = vmatpush1.msra.mxu0 0.0
        %738 = vmatprep.subr.mxu0 0.0
        %739 = vmatpush1.msra.mxu0 0.0
        %740 = vmatprep.subr.mxu0 0.0
        %741 = vmatpush1.msra.mxu0 0.0
        %742 = vmatprep.subr.mxu0 0.0
        %743 = vmatpush1.msra.mxu0 0.0
        %744 = vmatprep.subr.mxu0 0.0
        %745 = vmatpush1.msra.mxu0 0.0
        %746 = vmatprep.subr.mxu0 0.0
        %747 = vmatpush1.msra.mxu0 0.0
        %748 = vmatprep.subr.mxu0 0.0
        %749 = vmatpush1.msra.mxu0 0.0
        %750 = vmatprep.subr.mxu0 0.0
        %751 = vmatpush1.msra.mxu0 0.0
        %752 = vmatprep.subr.mxu0 0.0
        %753 = vmatpush1.msra.mxu0 0.0
        %754 = vmatprep.subr.mxu0 0.0
        %755 = vmatpush1.msra.mxu0 0.0
        %756 = vmatprep.subr.mxu0 0.0
        %757 = vmatpush1.msra.mxu0 0.0
        %758 = vmatprep.subr.mxu0 0.0
        %759 = vmatpush1.msra.mxu0 0.0
        %760 = vmatprep.subr.mxu0 0.0
        %761 = vmatpush1.msra.mxu0 0.0
        %762 = vmatprep.subr.mxu0 0.0
        %763 = vmatpush1.msra.mxu0 %v379
        %764 = vmatprep.subr.mxu0 0.0
        %765 = vmatpush1.msra.mxu0 %v376
        %766 = vmatprep.subr.mxu0 0.0
        %767 = vmatpush2.msra.mxu0 0.0
        %768 = vmatprep.subr.mxu0 0.0
        %769 = vmatpush2.msra.mxu0 0.0
        %770 = vmatprep.subr.mxu0 0.0
        %771 = vmatpush2.msra.mxu0 0.0
        %772 = vmatprep.subr.mxu0 0.0
        %773 = vmatpush2.msra.mxu0 0.0
        %774 = vmatprep.subr.mxu0 0.0
        %775 = vmatpush2.msra.mxu0 0.0
        %776 = vmatprep.subr.mxu0 0.0
        %777 = vmatpush2.msra.mxu0 0.0
        %778 = vmatprep.subr.mxu0 0.0
        %779 = vmatpush2.msra.mxu0 0.0
        %780 = vmatprep.subr.mxu0 0.0
        %781 = vmatpush2.msra.mxu0 0.0
        %782 = vmatprep.subr.mxu0 0.0
        %783 = vmatpush2.msra.mxu0 0.0
        %784 = vmatprep.subr.mxu0 0.0
        %785 = vmatpush2.msra.mxu0 0.0
        %786 = vmatprep.subr.mxu0 0.0
        %787 = vmatpush2.msra.mxu0 0.0
        %788 = vmatprep.subr.mxu0 0.0
        %789 = vmatpush2.msra.mxu0 0.0
        %790 = vmatprep.subr.mxu0 0.0
        %791 = vmatpush2.msra.mxu0 0.0
        %792 = vmatprep.subr.mxu0 0.0
        %793 = vmatpush2.msra.mxu0 0.0
        %794 = vmatprep.subr.mxu0 0.0
        %795 = vmatpush2.msra.mxu0 0.0
        %796 = vmatprep.subr.mxu0 0.0
        %797 = vmatpush2.msra.mxu0 0.0
        %798 = vmatprep.mubr.f32.mxu0 0.0
        %799 = vmatmul.mubr.f32.gmra.mxu0 %v382
        %v800 = vpop.f32.mrf.mxu0
        %v801 = vadd.f32 0.0, %v800
        %v802 = vpop.f32.mrf.mxu0
        %803 = vmatprep.mubr.f32.mxu0 0.0
        %804 = vmatmul.mubr.f32.gmra.mxu0 %v385
        %v805 = vpop.f32.mrf.mxu0
        %v806 = vadd.f32 0.0, %v805
        %v807 = vpop.f32.mrf.mxu0
        %808 = vmatprep.mubr.f32.mxu0 0.0
        %809 = vmatmul.mubr.f32.gmra.mxu0 %v388
        %v810 = vpop.f32.mrf.mxu0
        %v811 = vadd.f32 0.0, %v810
        %v812 = vpop.f32.mrf.mxu0
        %813 = vmatprep.mubr.f32.mxu0 0.0
        %814 = vmatmul.mubr.f32.gmra.mxu0 %v391
        %v815 = vpop.f32.mrf.mxu0
        %v816 = vadd.f32 0.0, %v815
        %v817 = vpop.f32.mrf.mxu0
        %818 = vmatprep.mubr.f32.mxu0 0.0
        %819 = vmatmul.mubr.f32.gmra.mxu0 %v394
        %v820 = vpop.f32.mrf.mxu0
        %v821 = vadd.f32 0.0, %v820
        %v822 = vpop.f32.mrf.mxu0
        %823 = vmatprep.mubr.f32.mxu0 0.0
        %824 = vmatmul.mubr.f32.gmra.mxu0 %v397
        %v825 = vpop.f32.mrf.mxu0
        %v826 = vadd.f32 0.0, %v825
        %v827 = vpop.f32.mrf.mxu0
        %828 = vmatprep.mubr.f32.mxu0 0.0
        %829 = vmatmul.mubr.f32.gmra.mxu0 %v400
        %v830 = vpop.f32.mrf.mxu0
        %v831 = vadd.f32 0.0, %v830
        %v832 = vpop.f32.mrf.mxu0
        %833 = vmatprep.mubr.f32.mxu0 0.0
        %834 = vmatmul.mubr.f32.gmra.mxu0 %v403
        %v835 = vpop.f32.mrf.mxu0
        %v836 = vadd.f32 0.0, %v835
        %v837 = vpop.f32.mrf.mxu0
        %838 = vmatprep.mubr.f32.mxu0 0.0
        %839 = vmatmul.mubr.f32.gmra.mxu0 %v406
        %v840 = vpop.f32.mrf.mxu0
        %v841 = vadd.f32 0.0, %v840
        %v842 = vpop.f32.mrf.mxu0
        %843 = vmatprep.mubr.f32.mxu0 0.0
        %844 = vmatmul.mubr.f32.gmra.mxu0 %v409
        %v845 = vpop.f32.mrf.mxu0
        %v846 = vadd.f32 0.0, %v845
        %v847 = vpop.f32.mrf.mxu0
        %848 = vmatprep.mubr.f32.mxu0 0.0
        %849 = vmatmul.mubr.f32.gmra.mxu0 %v412
        %v850 = vpop.f32.mrf.mxu0
        %v851 = vadd.f32 0.0, %v850
        %v852 = vpop.f32.mrf.mxu0
        %853 = vmatprep.mubr.f32.mxu0 0.0
        %854 = vmatmul.mubr.f32.gmra.mxu0 %v415
        %v855 = vpop.f32.mrf.mxu0
        %v856 = vadd.f32 0.0, %v855
        %v857 = vpop.f32.mrf.mxu0
        %858 = vmatprep.mubr.f32.mxu0 0.0
        %859 = vmatmul.mubr.f32.gmra.mxu0 %v418
        %v860 = vpop.f32.mrf.mxu0
        %v861 = vadd.f32 0.0, %v860
        %v862 = vpop.f32.mrf.mxu0
        %863 = vmatprep.mubr.f32.mxu0 0.0
        %864 = vmatmul.mubr.f32.gmra.mxu0 %v421
        %v865 = vpop.f32.mrf.mxu0
        %v866 = vadd.f32 0.0, %v865
        %v867 = vpop.f32.mrf.mxu0
        %868 = vmatprep.mubr.f32.mxu0 0.0
        %869 = vmatmul.mubr.f32.gmra.mxu0 %v424
        %v870 = vpop.f32.mrf.mxu0
        %v871 = vadd.f32 0.0, %v870
        %v872 = vpop.f32.mrf.mxu0
        %873 = vmatprep.mubr.f32.mxu0 0.0
        %874 = vmatmul.mubr.f32.gmra.mxu0 %v427
        %v875 = vpop.f32.mrf.mxu0
        %v876 = vadd.f32 0.0, %v875
        %v877 = vpop.f32.mrf.mxu0
        %878 = vmatprep.mubr.f32.mxu0 0.0
        %879 = vmatmul.mubr.f32.gmra.mxu0 %v430
        %v880 = vpop.f32.mrf.mxu0
        %v881 = vadd.f32 0.0, %v880
        %v882 = vpop.f32.mrf.mxu0
        %883 = vmatprep.mubr.f32.mxu0 0.0
        %884 = vmatmul.mubr.f32.gmra.mxu0 %v433
        %v885 = vpop.f32.mrf.mxu0
        %v886 = vadd.f32 0.0, %v885
        %v887 = vpop.f32.mrf.mxu0
        %888 = vmatprep.mubr.f32.mxu0 0.0
        %889 = vmatmul.mubr.f32.gmra.mxu0 %v436
        %v890 = vpop.f32.mrf.mxu0
        %v891 = vadd.f32 0.0, %v890
        %v892 = vpop.f32.mrf.mxu0
        %893 = vmatprep.mubr.f32.mxu0 0.0
        %894 = vmatmul.mubr.f32.gmra.mxu0 %v439
        %v895 = vpop.f32.mrf.mxu0
        %v896 = vadd.f32 0.0, %v895
        %v897 = vpop.f32.mrf.mxu0
        %898 = vmatprep.mubr.f32.mxu0 0.0
        %899 = vmatmul.mubr.f32.gmra.mxu0 %v442
        %v900 = vpop.f32.mrf.mxu0
        %v901 = vadd.f32 0.0, %v900
        %v902 = vpop.f32.mrf.mxu0
        %903 = vmatprep.mubr.f32.mxu0 0.0
        %904 = vmatmul.mubr.f32.gmra.mxu0 %v445
        %v905 = vpop.f32.mrf.mxu0
        %v906 = vadd.f32 0.0, %v905
        %v907 = vpop.f32.mrf.mxu0
        %908 = vmatprep.mubr.f32.mxu0 0.0
        %909 = vmatmul.mubr.f32.gmra.mxu0 %v448
        %v910 = vpop.f32.mrf.mxu0
        %v911 = vadd.f32 0.0, %v910
        %v912 = vpop.f32.mrf.mxu0
        %913 = vmatprep.mubr.f32.mxu0 0.0
        %914 = vmatmul.mubr.f32.gmra.mxu0 %v451
        %v915 = vpop.f32.mrf.mxu0
        %v916 = vadd.f32 0.0, %v915
        %v917 = vpop.f32.mrf.mxu0
        %918 = vmatprep.mubr.f32.mxu0 0.0
        %919 = vmatmul.mubr.f32.gmra.mxu0 %v454
        %v920 = vpop.f32.mrf.mxu0
        %v921 = vadd.f32 0.0, %v920
        %v922 = vpop.f32.mrf.mxu0
        %923 = vmatprep.mubr.f32.mxu0 0.0
        %924 = vmatmul.mubr.f32.gmra.mxu0 %v457
        %v925 = vpop.f32.mrf.mxu0
        %v926 = vadd.f32 0.0, %v925
        %v927 = vpop.f32.mrf.mxu0
        %928 = vmatprep.mubr.f32.mxu0 0.0
        %929 = vmatmul.mubr.f32.gmra.mxu0 %v460
        %v930 = vpop.f32.mrf.mxu0
        %v931 = vadd.f32 0.0, %v930
        %v932 = vpop.f32.mrf.mxu0
        %933 = vmatprep.mubr.f32.mxu0 0.0
        %934 = vmatmul.mubr.f32.gmra.mxu0 %v463
        %v935 = vpop.f32.mrf.mxu0
        %v936 = vadd.f32 0.0, %v935
        %v937 = vpop.f32.mrf.mxu0
        %938 = vmatprep.mubr.f32.mxu0 0.0
        %939 = vmatmul.mubr.f32.gmra.mxu0 %v466
        %v940 = vpop.f32.mrf.mxu0
        %v941 = vadd.f32 0.0, %v940
        %v942 = vpop.f32.mrf.mxu0
        %943 = vmatprep.mubr.f32.mxu0 0.0
        %944 = vmatmul.mubr.f32.gmra.mxu0 %v469
        %v945 = vpop.f32.mrf.mxu0
        %v946 = vadd.f32 0.0, %v945
        %v947 = vpop.f32.mrf.mxu0
        %948 = vmatprep.mubr.f32.mxu0 0.0
        %949 = vmatmul.mubr.f32.gmra.mxu0 %v472
        %v950 = vpop.f32.mrf.mxu0
        %v951 = vadd.f32 0.0, %v950
        %v952 = vpop.f32.mrf.mxu0
        %953 = vmatprep.mubr.f32.mxu0 0.0
        %954 = vmatmul.mubr.f32.gmra.mxu0 %v475
        %v955 = vpop.f32.mrf.mxu0
        %v956 = vadd.f32 0.0, %v955
        %v957 = vpop.f32.mrf.mxu0
        %958 = vdwg.mxu0
        %v959 = vld [vmem:[%s329] sm:$0xff]
        %v960 = vld [vmem:[%s329 + $0x8] sm:$0xff]
        %v961 = vld [vmem:[%s329 + $0x10] sm:$0xff]
        %v962 = vld [vmem:[%s329 + $0x18] sm:$0xff]
        %v963 = vld [vmem:[%s329 + $0x20] sm:$0xff]
        %v964 = vld [vmem:[%s329 + $0x28] sm:$0xff]
        %v965 = vld [vmem:[%s329 + $0x30] sm:$0xff]
        %v966 = vld [vmem:[%s329 + $0x38] sm:$0xff]
        %v967 = vld [vmem:[%s329 + $0x40] sm:$0xff]
        %v968 = vld [vmem:[%s329 + $0x48] sm:$0xff]
        %v969 = vld [vmem:[%s329 + $0x50] sm:$0xff]
        %v970 = vld [vmem:[%s329 + $0x58] sm:$0xff]
        %v971 = vld [vmem:[%s329 + $0x60] sm:$0xff]
        %v972 = vld [vmem:[%s329 + $0x68] sm:$0xff]
        %v973 = vld [vmem:[%s329 + $0x70] sm:$0xff]
        %v974 = vld [vmem:[%s329 + $0x78] sm:$0xff]
        %v975 = vld [vmem:[%s329 + $0x80] sm:$0xff]
        %v976 = vld [vmem:[%s329 + $0x88] sm:$0xff]
        %v977 = vld [vmem:[%s329 + $0x90] sm:$0xff]
        %v978 = vld [vmem:[%s329 + $0x98] sm:$0xff]
        %v979 = vld [vmem:[%s329 + $0xa0] sm:$0xff]
        %v980 = vld [vmem:[%s329 + $0xa8] sm:$0xff]
        %v981 = vld [vmem:[%s329 + $0xb0] sm:$0xff]
        %v982 = vld [vmem:[%s329 + $0xb8] sm:$0xff]
        %v983 = vld [vmem:[%s329 + $0xc0] sm:$0xff]
        %v984 = vld [vmem:[%s329 + $0xc8] sm:$0xff]
        %v985 = vld [vmem:[%s329 + $0xd0] sm:$0xff]
        %v986 = vld [vmem:[%s329 + $0xd8] sm:$0xff]
        %v987 = vld [vmem:[%s329 + $0xe0] sm:$0xff]
        %v988 = vld [vmem:[%s329 + $0xe8] sm:$0xff]
        %v989 = vld [vmem:[%s329 + $0xf0] sm:$0xff]
        %v990 = vld [vmem:[%s329 + $0xf8] sm:$0xff]
        %v991 = vld [vmem:[%s338] sm:$0x7]
        %993 = vset.pattern.permute.xlu0 0
        %994 = vperm.xlu0 %993, %v959
        %v995 = vpop.permute.xlu0 %994
        %998 = vset.pattern.permute.xlu0 0
        %999 = vperm.xlu0 %998, %v960
        %v1000 = vpop.permute.xlu0 %999
        %1003 = vset.pattern.permute.xlu0 0
        %1004 = vperm.xlu0 %1003, %v961
        %v1005 = vpop.permute.xlu0 %1004
        %1008 = vset.pattern.permute.xlu0 0
        %1009 = vperm.xlu0 %1008, %v962
        %v1010 = vpop.permute.xlu0 %1009
        %1013 = vset.pattern.permute.xlu0 0
        %1014 = vperm.xlu0 %1013, %v963
        %v1015 = vpop.permute.xlu0 %1014
        %1018 = vset.pattern.permute.xlu0 0
        %1019 = vperm.xlu0 %1018, %v964
        %v1020 = vpop.permute.xlu0 %1019
        %1023 = vset.pattern.permute.xlu0 0
        %1024 = vperm.xlu0 %1023, %v965
        %v1025 = vpop.permute.xlu0 %1024
        %1028 = vset.pattern.permute.xlu0 0
        %1029 = vperm.xlu0 %1028, %v966
        %v1030 = vpop.permute.xlu0 %1029
        %1033 = vset.pattern.permute.xlu0 0
        %1034 = vperm.xlu0 %1033, %v967
        %v1035 = vpop.permute.xlu0 %1034
        %1038 = vset.pattern.permute.xlu0 0
        %1039 = vperm.xlu0 %1038, %v968
        %v1040 = vpop.permute.xlu0 %1039
        %1043 = vset.pattern.permute.xlu0 0
        %1044 = vperm.xlu0 %1043, %v969
        %v1045 = vpop.permute.xlu0 %1044
        %1048 = vset.pattern.permute.xlu0 0
        %1049 = vperm.xlu0 %1048, %v970
        %v1050 = vpop.permute.xlu0 %1049
        %1053 = vset.pattern.permute.xlu0 0
        %1054 = vperm.xlu0 %1053, %v971
        %v1055 = vpop.permute.xlu0 %1054
        %1058 = vset.pattern.permute.xlu0 0
        %1059 = vperm.xlu0 %1058, %v972
        %v1060 = vpop.permute.xlu0 %1059
        %1063 = vset.pattern.permute.xlu0 0
        %1064 = vperm.xlu0 %1063, %v973
        %v1065 = vpop.permute.xlu0 %1064
        %1068 = vset.pattern.permute.xlu0 0
        %1069 = vperm.xlu0 %1068, %v974
        %v1070 = vpop.permute.xlu0 %1069
        %1073 = vset.pattern.permute.xlu0 0
        %1074 = vperm.xlu0 %1073, %v975
        %v1075 = vpop.permute.xlu0 %1074
        %1078 = vset.pattern.permute.xlu0 0
        %1079 = vperm.xlu0 %1078, %v976
        %v1080 = vpop.permute.xlu0 %1079
        %1083 = vset.pattern.permute.xlu0 0
        %1084 = vperm.xlu0 %1083, %v977
        %v1085 = vpop.permute.xlu0 %1084
        %1088 = vset.pattern.permute.xlu0 0
        %1089 = vperm.xlu0 %1088, %v978
        %v1090 = vpop.permute.xlu0 %1089
        %1093 = vset.pattern.permute.xlu0 0
        %1094 = vperm.xlu0 %1093, %v979
        %v1095 = vpop.permute.xlu0 %1094
        %1098 = vset.pattern.permute.xlu0 0
        %1099 = vperm.xlu0 %1098, %v980
        %v1100 = vpop.permute.xlu0 %1099
        %1103 = vset.pattern.permute.xlu0 0
        %1104 = vperm.xlu0 %1103, %v981
        %v1105 = vpop.permute.xlu0 %1104
        %1108 = vset.pattern.permute.xlu0 0
        %1109 = vperm.xlu0 %1108, %v982
        %v1110 = vpop.permute.xlu0 %1109
        %1113 = vset.pattern.permute.xlu0 0
        %1114 = vperm.xlu0 %1113, %v983
        %v1115 = vpop.permute.xlu0 %1114
        %1118 = vset.pattern.permute.xlu0 0
        %1119 = vperm.xlu0 %1118, %v984
        %v1120 = vpop.permute.xlu0 %1119
        %1123 = vset.pattern.permute.xlu0 0
        %1124 = vperm.xlu0 %1123, %v985
        %v1125 = vpop.permute.xlu0 %1124
        %1128 = vset.pattern.permute.xlu0 0
        %1129 = vperm.xlu0 %1128, %v986
        %v1130 = vpop.permute.xlu0 %1129
        %1133 = vset.pattern.permute.xlu0 0
        %1134 = vperm.xlu0 %1133, %v987
        %v1135 = vpop.permute.xlu0 %1134
        %1138 = vset.pattern.permute.xlu0 0
        %1139 = vperm.xlu0 %1138, %v988
        %v1140 = vpop.permute.xlu0 %1139
        %1143 = vset.pattern.permute.xlu0 0
        %1144 = vperm.xlu0 %1143, %v989
        %v1145 = vpop.permute.xlu0 %1144
        %1148 = vset.pattern.permute.xlu0 0
        %1149 = vperm.xlu0 %1148, %v990
        %v1150 = vpop.permute.xlu0 %1149
        %v1153 = vlaneseq
        %v1154 = vshrl.u32 %v1153, 7
        %v1155 = vsub.s32 0, %v1154
        %v1156 = vrot.slane %v991, %v1155
        %v1157 = vlaneseq
        %v1158 = vshrl.u32 %v1157, 7
        %v1159 = vsub.s32 1, %v1158
        %v1160 = vrot.slane %v991, %v1159
        %v1161 = vlaneseq
        %v1162 = vshrl.u32 %v1161, 7
        %v1163 = vsub.s32 2, %v1162
        %v1164 = vrot.slane %v991, %v1163
        %v1168 = vadd.f32 %v995, %v1156
        %v1169 = vadd.f32 %v995, %v1160
        %v1170 = vadd.f32 %v995, %v1164
        %v1171 = vadd.f32 %v1000, %v1156
        %v1172 = vadd.f32 %v1000, %v1160
        %v1173 = vadd.f32 %v1000, %v1164
        %v1174 = vadd.f32 %v1005, %v1156
        %v1175 = vadd.f32 %v1005, %v1160
        %v1176 = vadd.f32 %v1005, %v1164
        %v1177 = vadd.f32 %v1010, %v1156
        %v1178 = vadd.f32 %v1010, %v1160
        %v1179 = vadd.f32 %v1010, %v1164
        %v1180 = vadd.f32 %v1015, %v1156
        %v1181 = vadd.f32 %v1015, %v1160
        %v1182 = vadd.f32 %v1015, %v1164
        %v1183 = vadd.f32 %v1020, %v1156
        %v1184 = vadd.f32 %v1020, %v1160
        %v1185 = vadd.f32 %v1020, %v1164
        %v1186 = vadd.f32 %v1025, %v1156
        %v1187 = vadd.f32 %v1025, %v1160
        %v1188 = vadd.f32 %v1025, %v1164
        %v1189 = vadd.f32 %v1030, %v1156
        %v1190 = vadd.f32 %v1030, %v1160
        %v1191 = vadd.f32 %v1030, %v1164
        %v1192 = vadd.f32 %v1035, %v1156
        %v1193 = vadd.f32 %v1035, %v1160
        %v1194 = vadd.f32 %v1035, %v1164
        %v1195 = vadd.f32 %v1040, %v1156
        %v1196 = vadd.f32 %v1040, %v1160
        %v1197 = vadd.f32 %v1040, %v1164
        %v1198 = vadd.f32 %v1045, %v1156
        %v1199 = vadd.f32 %v1045, %v1160
        %v1200 = vadd.f32 %v1045, %v1164
        %v1201 = vadd.f32 %v1050, %v1156
        %v1202 = vadd.f32 %v1050, %v1160
        %v1203 = vadd.f32 %v1050, %v1164
        %v1204 = vadd.f32 %v1055, %v1156
        %v1205 = vadd.f32 %v1055, %v1160
        %v1206 = vadd.f32 %v1055, %v1164
        %v1207 = vadd.f32 %v1060, %v1156
        %v1208 = vadd.f32 %v1060, %v1160
        %v1209 = vadd.f32 %v1060, %v1164
        %v1210 = vadd.f32 %v1065, %v1156
        %v1211 = vadd.f32 %v1065, %v1160
        %v1212 = vadd.f32 %v1065, %v1164
        %v1213 = vadd.f32 %v1070, %v1156
        %v1214 = vadd.f32 %v1070, %v1160
        %v1215 = vadd.f32 %v1070, %v1164
        %v1216 = vadd.f32 %v1075, %v1156
        %v1217 = vadd.f32 %v1075, %v1160
        %v1218 = vadd.f32 %v1075, %v1164
        %v1219 = vadd.f32 %v1080, %v1156
        %v1220 = vadd.f32 %v1080, %v1160
        %v1221 = vadd.f32 %v1080, %v1164
        %v1222 = vadd.f32 %v1085, %v1156
        %v1223 = vadd.f32 %v1085, %v1160
        %v1224 = vadd.f32 %v1085, %v1164
        %v1225 = vadd.f32 %v1090, %v1156
        %v1226 = vadd.f32 %v1090, %v1160
        %v1227 = vadd.f32 %v1090, %v1164
        %v1228 = vadd.f32 %v1095, %v1156
        %v1229 = vadd.f32 %v1095, %v1160
        %v1230 = vadd.f32 %v1095, %v1164
        %v1231 = vadd.f32 %v1100, %v1156
        %v1232 = vadd.f32 %v1100, %v1160
        %v1233 = vadd.f32 %v1100, %v1164
        %v1234 = vadd.f32 %v1105, %v1156
        %v1235 = vadd.f32 %v1105, %v1160
        %v1236 = vadd.f32 %v1105, %v1164
        %v1237 = vadd.f32 %v1110, %v1156
        %v1238 = vadd.f32 %v1110, %v1160
        %v1239 = vadd.f32 %v1110, %v1164
        %v1240 = vadd.f32 %v1115, %v1156
        %v1241 = vadd.f32 %v1115, %v1160
        %v1242 = vadd.f32 %v1115, %v1164
        %v1243 = vadd.f32 %v1120, %v1156
        %v1244 = vadd.f32 %v1120, %v1160
        %v1245 = vadd.f32 %v1120, %v1164
        %v1246 = vadd.f32 %v1125, %v1156
        %v1247 = vadd.f32 %v1125, %v1160
        %v1248 = vadd.f32 %v1125, %v1164
        %v1249 = vadd.f32 %v1130, %v1156
        %v1250 = vadd.f32 %v1130, %v1160
        %v1251 = vadd.f32 %v1130, %v1164
        %v1252 = vadd.f32 %v1135, %v1156
        %v1253 = vadd.f32 %v1135, %v1160
        %v1254 = vadd.f32 %v1135, %v1164
        %v1255 = vadd.f32 %v1140, %v1156
        %v1256 = vadd.f32 %v1140, %v1160
        %v1257 = vadd.f32 %v1140, %v1164
        %v1258 = vadd.f32 %v1145, %v1156
        %v1259 = vadd.f32 %v1145, %v1160
        %v1260 = vadd.f32 %v1145, %v1164
        %v1261 = vadd.f32 %v1150, %v1156
        %v1262 = vadd.f32 %v1150, %v1160
        %v1263 = vadd.f32 %v1150, %v1164
        %v1264 = vmul.f32 %v544, 2.0
        %v1265 = vmul.f32 %v546, 2.0
        %v1266 = vmul.f32 %v801, 2.0
        %v1267 = vmul.f32 %v550, 2.0
        %v1268 = vmul.f32 %v552, 2.0
        %v1269 = vmul.f32 %v806, 2.0
        %v1270 = vmul.f32 %v556, 2.0
        %v1271 = vmul.f32 %v558, 2.0
        %v1272 = vmul.f32 %v811, 2.0
        %v1273 = vmul.f32 %v562, 2.0
        %v1274 = vmul.f32 %v564, 2.0
        %v1275 = vmul.f32 %v816, 2.0
        %v1276 = vmul.f32 %v568, 2.0
        %v1277 = vmul.f32 %v570, 2.0
        %v1278 = vmul.f32 %v821, 2.0
        %v1279 = vmul.f32 %v574, 2.0
        %v1280 = vmul.f32 %v576, 2.0
        %v1281 = vmul.f32 %v826, 2.0
        %v1282 = vmul.f32 %v580, 2.0
        %v1283 = vmul.f32 %v582, 2.0
        %v1284 = vmul.f32 %v831, 2.0
        %v1285 = vmul.f32 %v586, 2.0
        %v1286 = vmul.f32 %v588, 2.0
        %v1287 = vmul.f32 %v836, 2.0
        %v1288 = vmul.f32 %v592, 2.0
        %v1289 = vmul.f32 %v594, 2.0
        %v1290 = vmul.f32 %v841, 2.0
        %v1291 = vmul.f32 %v598, 2.0
        %v1292 = vmul.f32 %v600, 2.0
        %v1293 = vmul.f32 %v846, 2.0
        %v1294 = vmul.f32 %v604, 2.0
        %v1295 = vmul.f32 %v606, 2.0
        %v1296 = vmul.f32 %v851, 2.0
        %v1297 = vmul.f32 %v610, 2.0
        %v1298 = vmul.f32 %v612, 2.0
        %v1299 = vmul.f32 %v856, 2.0
        %v1300 = vmul.f32 %v616, 2.0
        %v1301 = vmul.f32 %v618, 2.0
        %v1302 = vmul.f32 %v861, 2.0
        %v1303 = vmul.f32 %v622, 2.0
        %v1304 = vmul.f32 %v624, 2.0
        %v1305 = vmul.f32 %v866, 2.0
        %v1306 = vmul.f32 %v628, 2.0
        %v1307 = vmul.f32 %v630, 2.0
        %v1308 = vmul.f32 %v871, 2.0
        %v1309 = vmul.f32 %v634, 2.0
        %v1310 = vmul.f32 %v636, 2.0
        %v1311 = vmul.f32 %v876, 2.0
        %v1312 = vmul.f32 %v640, 2.0
        %v1313 = vmul.f32 %v642, 2.0
        %v1314 = vmul.f32 %v881, 2.0
        %v1315 = vmul.f32 %v646, 2.0
        %v1316 = vmul.f32 %v648, 2.0
        %v1317 = vmul.f32 %v886, 2.0
        %v1318 = vmul.f32 %v652, 2.0
        %v1319 = vmul.f32 %v654, 2.0
        %v1320 = vmul.f32 %v891, 2.0
        %v1321 = vmul.f32 %v658, 2.0
        %v1322 = vmul.f32 %v660, 2.0
        %v1323 = vmul.f32 %v896, 2.0
        %v1324 = vmul.f32 %v664, 2.0
        %v1325 = vmul.f32 %v666, 2.0
        %v1326 = vmul.f32 %v901, 2.0
        %v1327 = vmul.f32 %v670, 2.0
        %v1328 = vmul.f32 %v672, 2.0
        %v1329 = vmul.f32 %v906, 2.0
        %v1330 = vmul.f32 %v676, 2.0
        %v1331 = vmul.f32 %v678, 2.0
        %v1332 = vmul.f32 %v911, 2.0
        %v1333 = vmul.f32 %v682, 2.0
        %v1334 = vmul.f32 %v684, 2.0
        %v1335 = vmul.f32 %v916, 2.0
        %v1336 = vmul.f32 %v688, 2.0
        %v1337 = vmul.f32 %v690, 2.0
        %v1338 = vmul.f32 %v921, 2.0
        %v1339 = vmul.f32 %v694, 2.0
        %v1340 = vmul.f32 %v696, 2.0
        %v1341 = vmul.f32 %v926, 2.0
        %v1342 = vmul.f32 %v700, 2.0
        %v1343 = vmul.f32 %v702, 2.0
        %v1344 = vmul.f32 %v931, 2.0
        %v1345 = vmul.f32 %v706, 2.0
        %v1346 = vmul.f32 %v708, 2.0
        %v1347 = vmul.f32 %v936, 2.0
        %v1348 = vmul.f32 %v712, 2.0
        %v1349 = vmul.f32 %v714, 2.0
        %v1350 = vmul.f32 %v941, 2.0
        %v1351 = vmul.f32 %v718, 2.0
        %v1352 = vmul.f32 %v720, 2.0
        %v1353 = vmul.f32 %v946, 2.0
        %v1354 = vmul.f32 %v724, 2.0
        %v1355 = vmul.f32 %v726, 2.0
        %v1356 = vmul.f32 %v951, 2.0
        %v1357 = vmul.f32 %v730, 2.0
        %v1358 = vmul.f32 %v732, 2.0
        %v1359 = vmul.f32 %v956, 2.0
        %v1360 = vsub.f32 %v1168, %v1264
        %v1361 = vsub.f32 %v1169, %v1265
        %v1362 = vsub.f32 %v1170, %v1266
        %v1363 = vsub.f32 %v1171, %v1267
        %v1364 = vsub.f32 %v1172, %v1268
        %v1365 = vsub.f32 %v1173, %v1269
        %v1366 = vsub.f32 %v1174, %v1270
        %v1367 = vsub.f32 %v1175, %v1271
        %v1368 = vsub.f32 %v1176, %v1272
        %v1369 = vsub.f32 %v1177, %v1273
        %v1370 = vsub.f32 %v1178, %v1274
        %v1371 = vsub.f32 %v1179, %v1275
        %v1372 = vsub.f32 %v1180, %v1276
        %v1373 = vsub.f32 %v1181, %v1277
        %v1374 = vsub.f32 %v1182, %v1278
        %v1375 = vsub.f32 %v1183, %v1279
        %v1376 = vsub.f32 %v1184, %v1280
        %v1377 = vsub.f32 %v1185, %v1281
        %v1378 = vsub.f32 %v1186, %v1282
        %v1379 = vsub.f32 %v1187, %v1283
        %v1380 = vsub.f32 %v1188, %v1284
        %v1381 = vsub.f32 %v1189, %v1285
        %v1382 = vsub.f32 %v1190, %v1286
        %v1383 = vsub.f32 %v1191, %v1287
        %v1384 = vsub.f32 %v1192, %v1288
        %v1385 = vsub.f32 %v1193, %v1289
        %v1386 = vsub.f32 %v1194, %v1290
        %v1387 = vsub.f32 %v1195, %v1291
        %v1388 = vsub.f32 %v1196, %v1292
        %v1389 = vsub.f32 %v1197, %v1293
        %v1390 = vsub.f32 %v1198, %v1294
        %v1391 = vsub.f32 %v1199, %v1295
        %v1392 = vsub.f32 %v1200, %v1296
        %v1393 = vsub.f32 %v1201, %v1297
        %v1394 = vsub.f32 %v1202, %v1298
        %v1395 = vsub.f32 %v1203, %v1299
        %v1396 = vsub.f32 %v1204, %v1300
        %v1397 = vsub.f32 %v1205, %v1301
        %v1398 = vsub.f32 %v1206, %v1302
        %v1399 = vsub.f32 %v1207, %v1303
        %v1400 = vsub.f32 %v1208, %v1304
        %v1401 = vsub.f32 %v1209, %v1305
        %v1402 = vsub.f32 %v1210, %v1306
        %v1403 = vsub.f32 %v1211, %v1307
        %v1404 = vsub.f32 %v1212, %v1308
        %v1405 = vsub.f32 %v1213, %v1309
        %v1406 = vsub.f32 %v1214, %v1310
        %v1407 = vsub.f32 %v1215, %v1311
        %v1408 = vsub.f32 %v1216, %v1312
        %v1409 = vsub.f32 %v1217, %v1313
        %v1410 = vsub.f32 %v1218, %v1314
        %v1411 = vsub.f32 %v1219, %v1315
        %v1412 = vsub.f32 %v1220, %v1316
        %v1413 = vsub.f32 %v1221, %v1317
        %v1414 = vsub.f32 %v1222, %v1318
        %v1415 = vsub.f32 %v1223, %v1319
        %v1416 = vsub.f32 %v1224, %v1320
        %v1417 = vsub.f32 %v1225, %v1321
        %v1418 = vsub.f32 %v1226, %v1322
        %v1419 = vsub.f32 %v1227, %v1323
        %v1420 = vsub.f32 %v1228, %v1324
        %v1421 = vsub.f32 %v1229, %v1325
        %v1422 = vsub.f32 %v1230, %v1326
        %v1423 = vsub.f32 %v1231, %v1327
        %v1424 = vsub.f32 %v1232, %v1328
        %v1425 = vsub.f32 %v1233, %v1329
        %v1426 = vsub.f32 %v1234, %v1330
        %v1427 = vsub.f32 %v1235, %v1331
        %v1428 = vsub.f32 %v1236, %v1332
        %v1429 = vsub.f32 %v1237, %v1333
        %v1430 = vsub.f32 %v1238, %v1334
        %v1431 = vsub.f32 %v1239, %v1335
        %v1432 = vsub.f32 %v1240, %v1336
        %v1433 = vsub.f32 %v1241, %v1337
        %v1434 = vsub.f32 %v1242, %v1338
        %v1435 = vsub.f32 %v1243, %v1339
        %v1436 = vsub.f32 %v1244, %v1340
        %v1437 = vsub.f32 %v1245, %v1341
        %v1438 = vsub.f32 %v1246, %v1342
        %v1439 = vsub.f32 %v1247, %v1343
        %v1440 = vsub.f32 %v1248, %v1344
        %v1441 = vsub.f32 %v1249, %v1345
        %v1442 = vsub.f32 %v1250, %v1346
        %v1443 = vsub.f32 %v1251, %v1347
        %v1444 = vsub.f32 %v1252, %v1348
        %v1445 = vsub.f32 %v1253, %v1349
        %v1446 = vsub.f32 %v1254, %v1350
        %v1447 = vsub.f32 %v1255, %v1351
        %v1448 = vsub.f32 %v1256, %v1352
        %v1449 = vsub.f32 %v1257, %v1353
        %v1450 = vsub.f32 %v1258, %v1354
        %v1451 = vsub.f32 %v1259, %v1355
        %v1452 = vsub.f32 %v1260, %v1356
        %v1453 = vsub.f32 %v1261, %v1357
        %v1454 = vsub.f32 %v1262, %v1358
        %v1455 = vsub.f32 %v1263, %v1359
        %v1456 = vmax.f32 %v1360, 0.0
        %v1457 = vmax.f32 %v1361, 0.0
        %v1458 = vmax.f32 %v1362, 0.0
        %v1459 = vmax.f32 %v1363, 0.0
        %v1460 = vmax.f32 %v1364, 0.0
        %v1461 = vmax.f32 %v1365, 0.0
        %v1462 = vmax.f32 %v1366, 0.0
        %v1463 = vmax.f32 %v1367, 0.0
        %v1464 = vmax.f32 %v1368, 0.0
        %v1465 = vmax.f32 %v1369, 0.0
        %v1466 = vmax.f32 %v1370, 0.0
        %v1467 = vmax.f32 %v1371, 0.0
        %v1468 = vmax.f32 %v1372, 0.0
        %v1469 = vmax.f32 %v1373, 0.0
        %v1470 = vmax.f32 %v1374, 0.0
        %v1471 = vmax.f32 %v1375, 0.0
        %v1472 = vmax.f32 %v1376, 0.0
        %v1473 = vmax.f32 %v1377, 0.0
        %v1474 = vmax.f32 %v1378, 0.0
        %v1475 = vmax.f32 %v1379, 0.0
        %v1476 = vmax.f32 %v1380, 0.0
        %v1477 = vmax.f32 %v1381, 0.0
        %v1478 = vmax.f32 %v1382, 0.0
        %v1479 = vmax.f32 %v1383, 0.0
        %v1480 = vmax.f32 %v1384, 0.0
        %v1481 = vmax.f32 %v1385, 0.0
        %v1482 = vmax.f32 %v1386, 0.0
        %v1483 = vmax.f32 %v1387, 0.0
        %v1484 = vmax.f32 %v1388, 0.0
        %v1485 = vmax.f32 %v1389, 0.0
        %v1486 = vmax.f32 %v1390, 0.0
        %v1487 = vmax.f32 %v1391, 0.0
        %v1488 = vmax.f32 %v1392, 0.0
        %v1489 = vmax.f32 %v1393, 0.0
        %v1490 = vmax.f32 %v1394, 0.0
        %v1491 = vmax.f32 %v1395, 0.0
        %v1492 = vmax.f32 %v1396, 0.0
        %v1493 = vmax.f32 %v1397, 0.0
        %v1494 = vmax.f32 %v1398, 0.0
        %v1495 = vmax.f32 %v1399, 0.0
        %v1496 = vmax.f32 %v1400, 0.0
        %v1497 = vmax.f32 %v1401, 0.0
        %v1498 = vmax.f32 %v1402, 0.0
        %v1499 = vmax.f32 %v1403, 0.0
        %v1500 = vmax.f32 %v1404, 0.0
        %v1501 = vmax.f32 %v1405, 0.0
        %v1502 = vmax.f32 %v1406, 0.0
        %v1503 = vmax.f32 %v1407, 0.0
        %v1504 = vmax.f32 %v1408, 0.0
        %v1505 = vmax.f32 %v1409, 0.0
        %v1506 = vmax.f32 %v1410, 0.0
        %v1507 = vmax.f32 %v1411, 0.0
        %v1508 = vmax.f32 %v1412, 0.0
        %v1509 = vmax.f32 %v1413, 0.0
        %v1510 = vmax.f32 %v1414, 0.0
        %v1511 = vmax.f32 %v1415, 0.0
        %v1512 = vmax.f32 %v1416, 0.0
        %v1513 = vmax.f32 %v1417, 0.0
        %v1514 = vmax.f32 %v1418, 0.0
        %v1515 = vmax.f32 %v1419, 0.0
        %v1516 = vmax.f32 %v1420, 0.0
        %v1517 = vmax.f32 %v1421, 0.0
        %v1518 = vmax.f32 %v1422, 0.0
        %v1519 = vmax.f32 %v1423, 0.0
        %v1520 = vmax.f32 %v1424, 0.0
        %v1521 = vmax.f32 %v1425, 0.0
        %v1522 = vmax.f32 %v1426, 0.0
        %v1523 = vmax.f32 %v1427, 0.0
        %v1524 = vmax.f32 %v1428, 0.0
        %v1525 = vmax.f32 %v1429, 0.0
        %v1526 = vmax.f32 %v1430, 0.0
        %v1527 = vmax.f32 %v1431, 0.0
        %v1528 = vmax.f32 %v1432, 0.0
        %v1529 = vmax.f32 %v1433, 0.0
        %v1530 = vmax.f32 %v1434, 0.0
        %v1531 = vmax.f32 %v1435, 0.0
        %v1532 = vmax.f32 %v1436, 0.0
        %v1533 = vmax.f32 %v1437, 0.0
        %v1534 = vmax.f32 %v1438, 0.0
        %v1535 = vmax.f32 %v1439, 0.0
        %v1536 = vmax.f32 %v1440, 0.0
        %v1537 = vmax.f32 %v1441, 0.0
        %v1538 = vmax.f32 %v1442, 0.0
        %v1539 = vmax.f32 %v1443, 0.0
        %v1540 = vmax.f32 %v1444, 0.0
        %v1541 = vmax.f32 %v1445, 0.0
        %v1542 = vmax.f32 %v1446, 0.0
        %v1543 = vmax.f32 %v1447, 0.0
        %v1544 = vmax.f32 %v1448, 0.0
        %v1545 = vmax.f32 %v1449, 0.0
        %v1546 = vmax.f32 %v1450, 0.0
        %v1547 = vmax.f32 %v1451, 0.0
        %v1548 = vmax.f32 %v1452, 0.0
        %v1549 = vmax.f32 %v1453, 0.0
        %v1550 = vmax.f32 %v1454, 0.0
        %v1551 = vmax.f32 %v1455, 0.0
        %v1552 = vrsqrt.pop %v1456
        %v1553 = vmul.f32 %v1456, %v1552
        %vm1554 = vcmp.eq.f32.partialorder %v1456, inf
        %v1555 = vsel %vm1554, %v1456, %v1553
        %vm1556 = vcmp.eq.f32.partialorder %v1456, 0.0
        %v1557 = vand.u32 %v1456, 2147483648
        %v1558 = vsel %vm1556, %v1557, %v1555
        %v1559 = vrsqrt.pop %v1457
        %v1560 = vmul.f32 %v1457, %v1559
        %vm1561 = vcmp.eq.f32.partialorder %v1457, inf
        %v1562 = vsel %vm1561, %v1457, %v1560
        %vm1563 = vcmp.eq.f32.partialorder %v1457, 0.0
        %v1564 = vand.u32 %v1457, 2147483648
        %v1565 = vsel %vm1563, %v1564, %v1562
        %v1566 = vrsqrt.pop %v1458
        %v1567 = vmul.f32 %v1458, %v1566
        %vm1568 = vcmp.eq.f32.partialorder %v1458, inf
        %v1569 = vsel %vm1568, %v1458, %v1567
        %vm1570 = vcmp.eq.f32.partialorder %v1458, 0.0
        %v1571 = vand.u32 %v1458, 2147483648
        %v1572 = vsel %vm1570, %v1571, %v1569
        %v1573 = vrsqrt.pop %v1459
        %v1574 = vmul.f32 %v1459, %v1573
        %vm1575 = vcmp.eq.f32.partialorder %v1459, inf
        %v1576 = vsel %vm1575, %v1459, %v1574
        %vm1577 = vcmp.eq.f32.partialorder %v1459, 0.0
        %v1578 = vand.u32 %v1459, 2147483648
        %v1579 = vsel %vm1577, %v1578, %v1576
        %v1580 = vrsqrt.pop %v1460
        %v1581 = vmul.f32 %v1460, %v1580
        %vm1582 = vcmp.eq.f32.partialorder %v1460, inf
        %v1583 = vsel %vm1582, %v1460, %v1581
        %vm1584 = vcmp.eq.f32.partialorder %v1460, 0.0
        %v1585 = vand.u32 %v1460, 2147483648
        %v1586 = vsel %vm1584, %v1585, %v1583
        %v1587 = vrsqrt.pop %v1461
        %v1588 = vmul.f32 %v1461, %v1587
        %vm1589 = vcmp.eq.f32.partialorder %v1461, inf
        %v1590 = vsel %vm1589, %v1461, %v1588
        %vm1591 = vcmp.eq.f32.partialorder %v1461, 0.0
        %v1592 = vand.u32 %v1461, 2147483648
        %v1593 = vsel %vm1591, %v1592, %v1590
        %v1594 = vrsqrt.pop %v1462
        %v1595 = vmul.f32 %v1462, %v1594
        %vm1596 = vcmp.eq.f32.partialorder %v1462, inf
        %v1597 = vsel %vm1596, %v1462, %v1595
        %vm1598 = vcmp.eq.f32.partialorder %v1462, 0.0
        %v1599 = vand.u32 %v1462, 2147483648
        %v1600 = vsel %vm1598, %v1599, %v1597
        %v1601 = vrsqrt.pop %v1463
        %v1602 = vmul.f32 %v1463, %v1601
        %vm1603 = vcmp.eq.f32.partialorder %v1463, inf
        %v1604 = vsel %vm1603, %v1463, %v1602
        %vm1605 = vcmp.eq.f32.partialorder %v1463, 0.0
        %v1606 = vand.u32 %v1463, 2147483648
        %v1607 = vsel %vm1605, %v1606, %v1604
        %v1608 = vrsqrt.pop %v1464
        %v1609 = vmul.f32 %v1464, %v1608
        %vm1610 = vcmp.eq.f32.partialorder %v1464, inf
        %v1611 = vsel %vm1610, %v1464, %v1609
        %vm1612 = vcmp.eq.f32.partialorder %v1464, 0.0
        %v1613 = vand.u32 %v1464, 2147483648
        %v1614 = vsel %vm1612, %v1613, %v1611
        %v1615 = vrsqrt.pop %v1465
        %v1616 = vmul.f32 %v1465, %v1615
        %vm1617 = vcmp.eq.f32.partialorder %v1465, inf
        %v1618 = vsel %vm1617, %v1465, %v1616
        %vm1619 = vcmp.eq.f32.partialorder %v1465, 0.0
        %v1620 = vand.u32 %v1465, 2147483648
        %v1621 = vsel %vm1619, %v1620, %v1618
        %v1622 = vrsqrt.pop %v1466
        %v1623 = vmul.f32 %v1466, %v1622
        %vm1624 = vcmp.eq.f32.partialorder %v1466, inf
        %v1625 = vsel %vm1624, %v1466, %v1623
        %vm1626 = vcmp.eq.f32.partialorder %v1466, 0.0
        %v1627 = vand.u32 %v1466, 2147483648
        %v1628 = vsel %vm1626, %v1627, %v1625
        %v1629 = vrsqrt.pop %v1467
        %v1630 = vmul.f32 %v1467, %v1629
        %vm1631 = vcmp.eq.f32.partialorder %v1467, inf
        %v1632 = vsel %vm1631, %v1467, %v1630
        %vm1633 = vcmp.eq.f32.partialorder %v1467, 0.0
        %v1634 = vand.u32 %v1467, 2147483648
        %v1635 = vsel %vm1633, %v1634, %v1632
        %v1636 = vrsqrt.pop %v1468
        %v1637 = vmul.f32 %v1468, %v1636
        %vm1638 = vcmp.eq.f32.partialorder %v1468, inf
        %v1639 = vsel %vm1638, %v1468, %v1637
        %vm1640 = vcmp.eq.f32.partialorder %v1468, 0.0
        %v1641 = vand.u32 %v1468, 2147483648
        %v1642 = vsel %vm1640, %v1641, %v1639
        %v1643 = vrsqrt.pop %v1469
        %v1644 = vmul.f32 %v1469, %v1643
        %vm1645 = vcmp.eq.f32.partialorder %v1469, inf
        %v1646 = vsel %vm1645, %v1469, %v1644
        %vm1647 = vcmp.eq.f32.partialorder %v1469, 0.0
        %v1648 = vand.u32 %v1469, 2147483648
        %v1649 = vsel %vm1647, %v1648, %v1646
        %v1650 = vrsqrt.pop %v1470
        %v1651 = vmul.f32 %v1470, %v1650
        %vm1652 = vcmp.eq.f32.partialorder %v1470, inf
        %v1653 = vsel %vm1652, %v1470, %v1651
        %vm1654 = vcmp.eq.f32.partialorder %v1470, 0.0
        %v1655 = vand.u32 %v1470, 2147483648
        %v1656 = vsel %vm1654, %v1655, %v1653
        %v1657 = vrsqrt.pop %v1471
        %v1658 = vmul.f32 %v1471, %v1657
        %vm1659 = vcmp.eq.f32.partialorder %v1471, inf
        %v1660 = vsel %vm1659, %v1471, %v1658
        %vm1661 = vcmp.eq.f32.partialorder %v1471, 0.0
        %v1662 = vand.u32 %v1471, 2147483648
        %v1663 = vsel %vm1661, %v1662, %v1660
        %v1664 = vrsqrt.pop %v1472
        %v1665 = vmul.f32 %v1472, %v1664
        %vm1666 = vcmp.eq.f32.partialorder %v1472, inf
        %v1667 = vsel %vm1666, %v1472, %v1665
        %vm1668 = vcmp.eq.f32.partialorder %v1472, 0.0
        %v1669 = vand.u32 %v1472, 2147483648
        %v1670 = vsel %vm1668, %v1669, %v1667
        %v1671 = vrsqrt.pop %v1473
        %v1672 = vmul.f32 %v1473, %v1671
        %vm1673 = vcmp.eq.f32.partialorder %v1473, inf
        %v1674 = vsel %vm1673, %v1473, %v1672
        %vm1675 = vcmp.eq.f32.partialorder %v1473, 0.0
        %v1676 = vand.u32 %v1473, 2147483648
        %v1677 = vsel %vm1675, %v1676, %v1674
        %v1678 = vrsqrt.pop %v1474
        %v1679 = vmul.f32 %v1474, %v1678
        %vm1680 = vcmp.eq.f32.partialorder %v1474, inf
        %v1681 = vsel %vm1680, %v1474, %v1679
        %vm1682 = vcmp.eq.f32.partialorder %v1474, 0.0
        %v1683 = vand.u32 %v1474, 2147483648
        %v1684 = vsel %vm1682, %v1683, %v1681
        %v1685 = vrsqrt.pop %v1475
        %v1686 = vmul.f32 %v1475, %v1685
        %vm1687 = vcmp.eq.f32.partialorder %v1475, inf
        %v1688 = vsel %vm1687, %v1475, %v1686
        %vm1689 = vcmp.eq.f32.partialorder %v1475, 0.0
        %v1690 = vand.u32 %v1475, 2147483648
        %v1691 = vsel %vm1689, %v1690, %v1688
        %v1692 = vrsqrt.pop %v1476
        %v1693 = vmul.f32 %v1476, %v1692
        %vm1694 = vcmp.eq.f32.partialorder %v1476, inf
        %v1695 = vsel %vm1694, %v1476, %v1693
        %vm1696 = vcmp.eq.f32.partialorder %v1476, 0.0
        %v1697 = vand.u32 %v1476, 2147483648
        %v1698 = vsel %vm1696, %v1697, %v1695
        %v1699 = vrsqrt.pop %v1477
        %v1700 = vmul.f32 %v1477, %v1699
        %vm1701 = vcmp.eq.f32.partialorder %v1477, inf
        %v1702 = vsel %vm1701, %v1477, %v1700
        %vm1703 = vcmp.eq.f32.partialorder %v1477, 0.0
        %v1704 = vand.u32 %v1477, 2147483648
        %v1705 = vsel %vm1703, %v1704, %v1702
        %v1706 = vrsqrt.pop %v1478
        %v1707 = vmul.f32 %v1478, %v1706
        %vm1708 = vcmp.eq.f32.partialorder %v1478, inf
        %v1709 = vsel %vm1708, %v1478, %v1707
        %vm1710 = vcmp.eq.f32.partialorder %v1478, 0.0
        %v1711 = vand.u32 %v1478, 2147483648
        %v1712 = vsel %vm1710, %v1711, %v1709
        %v1713 = vrsqrt.pop %v1479
        %v1714 = vmul.f32 %v1479, %v1713
        %vm1715 = vcmp.eq.f32.partialorder %v1479, inf
        %v1716 = vsel %vm1715, %v1479, %v1714
        %vm1717 = vcmp.eq.f32.partialorder %v1479, 0.0
        %v1718 = vand.u32 %v1479, 2147483648
        %v1719 = vsel %vm1717, %v1718, %v1716
        %v1720 = vrsqrt.pop %v1480
        %v1721 = vmul.f32 %v1480, %v1720
        %vm1722 = vcmp.eq.f32.partialorder %v1480, inf
        %v1723 = vsel %vm1722, %v1480, %v1721
        %vm1724 = vcmp.eq.f32.partialorder %v1480, 0.0
        %v1725 = vand.u32 %v1480, 2147483648
        %v1726 = vsel %vm1724, %v1725, %v1723
        %v1727 = vrsqrt.pop %v1481
        %v1728 = vmul.f32 %v1481, %v1727
        %vm1729 = vcmp.eq.f32.partialorder %v1481, inf
        %v1730 = vsel %vm1729, %v1481, %v1728
        %vm1731 = vcmp.eq.f32.partialorder %v1481, 0.0
        %v1732 = vand.u32 %v1481, 2147483648
        %v1733 = vsel %vm1731, %v1732, %v1730
        %v1734 = vrsqrt.pop %v1482
        %v1735 = vmul.f32 %v1482, %v1734
        %vm1736 = vcmp.eq.f32.partialorder %v1482, inf
        %v1737 = vsel %vm1736, %v1482, %v1735
        %vm1738 = vcmp.eq.f32.partialorder %v1482, 0.0
        %v1739 = vand.u32 %v1482, 2147483648
        %v1740 = vsel %vm1738, %v1739, %v1737
        %v1741 = vrsqrt.pop %v1483
        %v1742 = vmul.f32 %v1483, %v1741
        %vm1743 = vcmp.eq.f32.partialorder %v1483, inf
        %v1744 = vsel %vm1743, %v1483, %v1742
        %vm1745 = vcmp.eq.f32.partialorder %v1483, 0.0
        %v1746 = vand.u32 %v1483, 2147483648
        %v1747 = vsel %vm1745, %v1746, %v1744
        %v1748 = vrsqrt.pop %v1484
        %v1749 = vmul.f32 %v1484, %v1748
        %vm1750 = vcmp.eq.f32.partialorder %v1484, inf
        %v1751 = vsel %vm1750, %v1484, %v1749
        %vm1752 = vcmp.eq.f32.partialorder %v1484, 0.0
        %v1753 = vand.u32 %v1484, 2147483648
        %v1754 = vsel %vm1752, %v1753, %v1751
        %v1755 = vrsqrt.pop %v1485
        %v1756 = vmul.f32 %v1485, %v1755
        %vm1757 = vcmp.eq.f32.partialorder %v1485, inf
        %v1758 = vsel %vm1757, %v1485, %v1756
        %vm1759 = vcmp.eq.f32.partialorder %v1485, 0.0
        %v1760 = vand.u32 %v1485, 2147483648
        %v1761 = vsel %vm1759, %v1760, %v1758
        %v1762 = vrsqrt.pop %v1486
        %v1763 = vmul.f32 %v1486, %v1762
        %vm1764 = vcmp.eq.f32.partialorder %v1486, inf
        %v1765 = vsel %vm1764, %v1486, %v1763
        %vm1766 = vcmp.eq.f32.partialorder %v1486, 0.0
        %v1767 = vand.u32 %v1486, 2147483648
        %v1768 = vsel %vm1766, %v1767, %v1765
        %v1769 = vrsqrt.pop %v1487
        %v1770 = vmul.f32 %v1487, %v1769
        %vm1771 = vcmp.eq.f32.partialorder %v1487, inf
        %v1772 = vsel %vm1771, %v1487, %v1770
        %vm1773 = vcmp.eq.f32.partialorder %v1487, 0.0
        %v1774 = vand.u32 %v1487, 2147483648
        %v1775 = vsel %vm1773, %v1774, %v1772
        %v1776 = vrsqrt.pop %v1488
        %v1777 = vmul.f32 %v1488, %v1776
        %vm1778 = vcmp.eq.f32.partialorder %v1488, inf
        %v1779 = vsel %vm1778, %v1488, %v1777
        %vm1780 = vcmp.eq.f32.partialorder %v1488, 0.0
        %v1781 = vand.u32 %v1488, 2147483648
        %v1782 = vsel %vm1780, %v1781, %v1779
        %v1783 = vrsqrt.pop %v1489
        %v1784 = vmul.f32 %v1489, %v1783
        %vm1785 = vcmp.eq.f32.partialorder %v1489, inf
        %v1786 = vsel %vm1785, %v1489, %v1784
        %vm1787 = vcmp.eq.f32.partialorder %v1489, 0.0
        %v1788 = vand.u32 %v1489, 2147483648
        %v1789 = vsel %vm1787, %v1788, %v1786
        %v1790 = vrsqrt.pop %v1490
        %v1791 = vmul.f32 %v1490, %v1790
        %vm1792 = vcmp.eq.f32.partialorder %v1490, inf
        %v1793 = vsel %vm1792, %v1490, %v1791
        %vm1794 = vcmp.eq.f32.partialorder %v1490, 0.0
        %v1795 = vand.u32 %v1490, 2147483648
        %v1796 = vsel %vm1794, %v1795, %v1793
        %v1797 = vrsqrt.pop %v1491
        %v1798 = vmul.f32 %v1491, %v1797
        %vm1799 = vcmp.eq.f32.partialorder %v1491, inf
        %v1800 = vsel %vm1799, %v1491, %v1798
        %vm1801 = vcmp.eq.f32.partialorder %v1491, 0.0
        %v1802 = vand.u32 %v1491, 2147483648
        %v1803 = vsel %vm1801, %v1802, %v1800
        %v1804 = vrsqrt.pop %v1492
        %v1805 = vmul.f32 %v1492, %v1804
        %vm1806 = vcmp.eq.f32.partialorder %v1492, inf
        %v1807 = vsel %vm1806, %v1492, %v1805
        %vm1808 = vcmp.eq.f32.partialorder %v1492, 0.0
        %v1809 = vand.u32 %v1492, 2147483648
        %v1810 = vsel %vm1808, %v1809, %v1807
        %v1811 = vrsqrt.pop %v1493
        %v1812 = vmul.f32 %v1493, %v1811
        %vm1813 = vcmp.eq.f32.partialorder %v1493, inf
        %v1814 = vsel %vm1813, %v1493, %v1812
        %vm1815 = vcmp.eq.f32.partialorder %v1493, 0.0
        %v1816 = vand.u32 %v1493, 2147483648
        %v1817 = vsel %vm1815, %v1816, %v1814
        %v1818 = vrsqrt.pop %v1494
        %v1819 = vmul.f32 %v1494, %v1818
        %vm1820 = vcmp.eq.f32.partialorder %v1494, inf
        %v1821 = vsel %vm1820, %v1494, %v1819
        %vm1822 = vcmp.eq.f32.partialorder %v1494, 0.0
        %v1823 = vand.u32 %v1494, 2147483648
        %v1824 = vsel %vm1822, %v1823, %v1821
        %v1825 = vrsqrt.pop %v1495
        %v1826 = vmul.f32 %v1495, %v1825
        %vm1827 = vcmp.eq.f32.partialorder %v1495, inf
        %v1828 = vsel %vm1827, %v1495, %v1826
        %vm1829 = vcmp.eq.f32.partialorder %v1495, 0.0
        %v1830 = vand.u32 %v1495, 2147483648
        %v1831 = vsel %vm1829, %v1830, %v1828
        %v1832 = vrsqrt.pop %v1496
        %v1833 = vmul.f32 %v1496, %v1832
        %vm1834 = vcmp.eq.f32.partialorder %v1496, inf
        %v1835 = vsel %vm1834, %v1496, %v1833
        %vm1836 = vcmp.eq.f32.partialorder %v1496, 0.0
        %v1837 = vand.u32 %v1496, 2147483648
        %v1838 = vsel %vm1836, %v1837, %v1835
        %v1839 = vrsqrt.pop %v1497
        %v1840 = vmul.f32 %v1497, %v1839
        %vm1841 = vcmp.eq.f32.partialorder %v1497, inf
        %v1842 = vsel %vm1841, %v1497, %v1840
        %vm1843 = vcmp.eq.f32.partialorder %v1497, 0.0
        %v1844 = vand.u32 %v1497, 2147483648
        %v1845 = vsel %vm1843, %v1844, %v1842
        %v1846 = vrsqrt.pop %v1498
        %v1847 = vmul.f32 %v1498, %v1846
        %vm1848 = vcmp.eq.f32.partialorder %v1498, inf
        %v1849 = vsel %vm1848, %v1498, %v1847
        %vm1850 = vcmp.eq.f32.partialorder %v1498, 0.0
        %v1851 = vand.u32 %v1498, 2147483648
        %v1852 = vsel %vm1850, %v1851, %v1849
        %v1853 = vrsqrt.pop %v1499
        %v1854 = vmul.f32 %v1499, %v1853
        %vm1855 = vcmp.eq.f32.partialorder %v1499, inf
        %v1856 = vsel %vm1855, %v1499, %v1854
        %vm1857 = vcmp.eq.f32.partialorder %v1499, 0.0
        %v1858 = vand.u32 %v1499, 2147483648
        %v1859 = vsel %vm1857, %v1858, %v1856
        %v1860 = vrsqrt.pop %v1500
        %v1861 = vmul.f32 %v1500, %v1860
        %vm1862 = vcmp.eq.f32.partialorder %v1500, inf
        %v1863 = vsel %vm1862, %v1500, %v1861
        %vm1864 = vcmp.eq.f32.partialorder %v1500, 0.0
        %v1865 = vand.u32 %v1500, 2147483648
        %v1866 = vsel %vm1864, %v1865, %v1863
        %v1867 = vrsqrt.pop %v1501
        %v1868 = vmul.f32 %v1501, %v1867
        %vm1869 = vcmp.eq.f32.partialorder %v1501, inf
        %v1870 = vsel %vm1869, %v1501, %v1868
        %vm1871 = vcmp.eq.f32.partialorder %v1501, 0.0
        %v1872 = vand.u32 %v1501, 2147483648
        %v1873 = vsel %vm1871, %v1872, %v1870
        %v1874 = vrsqrt.pop %v1502
        %v1875 = vmul.f32 %v1502, %v1874
        %vm1876 = vcmp.eq.f32.partialorder %v1502, inf
        %v1877 = vsel %vm1876, %v1502, %v1875
        %vm1878 = vcmp.eq.f32.partialorder %v1502, 0.0
        %v1879 = vand.u32 %v1502, 2147483648
        %v1880 = vsel %vm1878, %v1879, %v1877
        %v1881 = vrsqrt.pop %v1503
        %v1882 = vmul.f32 %v1503, %v1881
        %vm1883 = vcmp.eq.f32.partialorder %v1503, inf
        %v1884 = vsel %vm1883, %v1503, %v1882
        %vm1885 = vcmp.eq.f32.partialorder %v1503, 0.0
        %v1886 = vand.u32 %v1503, 2147483648
        %v1887 = vsel %vm1885, %v1886, %v1884
        %v1888 = vrsqrt.pop %v1504
        %v1889 = vmul.f32 %v1504, %v1888
        %vm1890 = vcmp.eq.f32.partialorder %v1504, inf
        %v1891 = vsel %vm1890, %v1504, %v1889
        %vm1892 = vcmp.eq.f32.partialorder %v1504, 0.0
        %v1893 = vand.u32 %v1504, 2147483648
        %v1894 = vsel %vm1892, %v1893, %v1891
        %v1895 = vrsqrt.pop %v1505
        %v1896 = vmul.f32 %v1505, %v1895
        %vm1897 = vcmp.eq.f32.partialorder %v1505, inf
        %v1898 = vsel %vm1897, %v1505, %v1896
        %vm1899 = vcmp.eq.f32.partialorder %v1505, 0.0
        %v1900 = vand.u32 %v1505, 2147483648
        %v1901 = vsel %vm1899, %v1900, %v1898
        %v1902 = vrsqrt.pop %v1506
        %v1903 = vmul.f32 %v1506, %v1902
        %vm1904 = vcmp.eq.f32.partialorder %v1506, inf
        %v1905 = vsel %vm1904, %v1506, %v1903
        %vm1906 = vcmp.eq.f32.partialorder %v1506, 0.0
        %v1907 = vand.u32 %v1506, 2147483648
        %v1908 = vsel %vm1906, %v1907, %v1905
        %v1909 = vrsqrt.pop %v1507
        %v1910 = vmul.f32 %v1507, %v1909
        %vm1911 = vcmp.eq.f32.partialorder %v1507, inf
        %v1912 = vsel %vm1911, %v1507, %v1910
        %vm1913 = vcmp.eq.f32.partialorder %v1507, 0.0
        %v1914 = vand.u32 %v1507, 2147483648
        %v1915 = vsel %vm1913, %v1914, %v1912
        %v1916 = vrsqrt.pop %v1508
        %v1917 = vmul.f32 %v1508, %v1916
        %vm1918 = vcmp.eq.f32.partialorder %v1508, inf
        %v1919 = vsel %vm1918, %v1508, %v1917
        %vm1920 = vcmp.eq.f32.partialorder %v1508, 0.0
        %v1921 = vand.u32 %v1508, 2147483648
        %v1922 = vsel %vm1920, %v1921, %v1919
        %v1923 = vrsqrt.pop %v1509
        %v1924 = vmul.f32 %v1509, %v1923
        %vm1925 = vcmp.eq.f32.partialorder %v1509, inf
        %v1926 = vsel %vm1925, %v1509, %v1924
        %vm1927 = vcmp.eq.f32.partialorder %v1509, 0.0
        %v1928 = vand.u32 %v1509, 2147483648
        %v1929 = vsel %vm1927, %v1928, %v1926
        %v1930 = vrsqrt.pop %v1510
        %v1931 = vmul.f32 %v1510, %v1930
        %vm1932 = vcmp.eq.f32.partialorder %v1510, inf
        %v1933 = vsel %vm1932, %v1510, %v1931
        %vm1934 = vcmp.eq.f32.partialorder %v1510, 0.0
        %v1935 = vand.u32 %v1510, 2147483648
        %v1936 = vsel %vm1934, %v1935, %v1933
        %v1937 = vrsqrt.pop %v1511
        %v1938 = vmul.f32 %v1511, %v1937
        %vm1939 = vcmp.eq.f32.partialorder %v1511, inf
        %v1940 = vsel %vm1939, %v1511, %v1938
        %vm1941 = vcmp.eq.f32.partialorder %v1511, 0.0
        %v1942 = vand.u32 %v1511, 2147483648
        %v1943 = vsel %vm1941, %v1942, %v1940
        %v1944 = vrsqrt.pop %v1512
        %v1945 = vmul.f32 %v1512, %v1944
        %vm1946 = vcmp.eq.f32.partialorder %v1512, inf
        %v1947 = vsel %vm1946, %v1512, %v1945
        %vm1948 = vcmp.eq.f32.partialorder %v1512, 0.0
        %v1949 = vand.u32 %v1512, 2147483648
        %v1950 = vsel %vm1948, %v1949, %v1947
        %v1951 = vrsqrt.pop %v1513
        %v1952 = vmul.f32 %v1513, %v1951
        %vm1953 = vcmp.eq.f32.partialorder %v1513, inf
        %v1954 = vsel %vm1953, %v1513, %v1952
        %vm1955 = vcmp.eq.f32.partialorder %v1513, 0.0
        %v1956 = vand.u32 %v1513, 2147483648
        %v1957 = vsel %vm1955, %v1956, %v1954
        %v1958 = vrsqrt.pop %v1514
        %v1959 = vmul.f32 %v1514, %v1958
        %vm1960 = vcmp.eq.f32.partialorder %v1514, inf
        %v1961 = vsel %vm1960, %v1514, %v1959
        %vm1962 = vcmp.eq.f32.partialorder %v1514, 0.0
        %v1963 = vand.u32 %v1514, 2147483648
        %v1964 = vsel %vm1962, %v1963, %v1961
        %v1965 = vrsqrt.pop %v1515
        %v1966 = vmul.f32 %v1515, %v1965
        %vm1967 = vcmp.eq.f32.partialorder %v1515, inf
        %v1968 = vsel %vm1967, %v1515, %v1966
        %vm1969 = vcmp.eq.f32.partialorder %v1515, 0.0
        %v1970 = vand.u32 %v1515, 2147483648
        %v1971 = vsel %vm1969, %v1970, %v1968
        %v1972 = vrsqrt.pop %v1516
        %v1973 = vmul.f32 %v1516, %v1972
        %vm1974 = vcmp.eq.f32.partialorder %v1516, inf
        %v1975 = vsel %vm1974, %v1516, %v1973
        %vm1976 = vcmp.eq.f32.partialorder %v1516, 0.0
        %v1977 = vand.u32 %v1516, 2147483648
        %v1978 = vsel %vm1976, %v1977, %v1975
        %v1979 = vrsqrt.pop %v1517
        %v1980 = vmul.f32 %v1517, %v1979
        %vm1981 = vcmp.eq.f32.partialorder %v1517, inf
        %v1982 = vsel %vm1981, %v1517, %v1980
        %vm1983 = vcmp.eq.f32.partialorder %v1517, 0.0
        %v1984 = vand.u32 %v1517, 2147483648
        %v1985 = vsel %vm1983, %v1984, %v1982
        %v1986 = vrsqrt.pop %v1518
        %v1987 = vmul.f32 %v1518, %v1986
        %vm1988 = vcmp.eq.f32.partialorder %v1518, inf
        %v1989 = vsel %vm1988, %v1518, %v1987
        %vm1990 = vcmp.eq.f32.partialorder %v1518, 0.0
        %v1991 = vand.u32 %v1518, 2147483648
        %v1992 = vsel %vm1990, %v1991, %v1989
        %v1993 = vrsqrt.pop %v1519
        %v1994 = vmul.f32 %v1519, %v1993
        %vm1995 = vcmp.eq.f32.partialorder %v1519, inf
        %v1996 = vsel %vm1995, %v1519, %v1994
        %vm1997 = vcmp.eq.f32.partialorder %v1519, 0.0
        %v1998 = vand.u32 %v1519, 2147483648
        %v1999 = vsel %vm1997, %v1998, %v1996
        %v2000 = vrsqrt.pop %v1520
        %v2001 = vmul.f32 %v1520, %v2000
        %vm2002 = vcmp.eq.f32.partialorder %v1520, inf
        %v2003 = vsel %vm2002, %v1520, %v2001
        %vm2004 = vcmp.eq.f32.partialorder %v1520, 0.0
        %v2005 = vand.u32 %v1520, 2147483648
        %v2006 = vsel %vm2004, %v2005, %v2003
        %v2007 = vrsqrt.pop %v1521
        %v2008 = vmul.f32 %v1521, %v2007
        %vm2009 = vcmp.eq.f32.partialorder %v1521, inf
        %v2010 = vsel %vm2009, %v1521, %v2008
        %vm2011 = vcmp.eq.f32.partialorder %v1521, 0.0
        %v2012 = vand.u32 %v1521, 2147483648
        %v2013 = vsel %vm2011, %v2012, %v2010
        %v2014 = vrsqrt.pop %v1522
        %v2015 = vmul.f32 %v1522, %v2014
        %vm2016 = vcmp.eq.f32.partialorder %v1522, inf
        %v2017 = vsel %vm2016, %v1522, %v2015
        %vm2018 = vcmp.eq.f32.partialorder %v1522, 0.0
        %v2019 = vand.u32 %v1522, 2147483648
        %v2020 = vsel %vm2018, %v2019, %v2017
        %v2021 = vrsqrt.pop %v1523
        %v2022 = vmul.f32 %v1523, %v2021
        %vm2023 = vcmp.eq.f32.partialorder %v1523, inf
        %v2024 = vsel %vm2023, %v1523, %v2022
        %vm2025 = vcmp.eq.f32.partialorder %v1523, 0.0
        %v2026 = vand.u32 %v1523, 2147483648
        %v2027 = vsel %vm2025, %v2026, %v2024
        %v2028 = vrsqrt.pop %v1524
        %v2029 = vmul.f32 %v1524, %v2028
        %vm2030 = vcmp.eq.f32.partialorder %v1524, inf
        %v2031 = vsel %vm2030, %v1524, %v2029
        %vm2032 = vcmp.eq.f32.partialorder %v1524, 0.0
        %v2033 = vand.u32 %v1524, 2147483648
        %v2034 = vsel %vm2032, %v2033, %v2031
        %v2035 = vrsqrt.pop %v1525
        %v2036 = vmul.f32 %v1525, %v2035
        %vm2037 = vcmp.eq.f32.partialorder %v1525, inf
        %v2038 = vsel %vm2037, %v1525, %v2036
        %vm2039 = vcmp.eq.f32.partialorder %v1525, 0.0
        %v2040 = vand.u32 %v1525, 2147483648
        %v2041 = vsel %vm2039, %v2040, %v2038
        %v2042 = vrsqrt.pop %v1526
        %v2043 = vmul.f32 %v1526, %v2042
        %vm2044 = vcmp.eq.f32.partialorder %v1526, inf
        %v2045 = vsel %vm2044, %v1526, %v2043
        %vm2046 = vcmp.eq.f32.partialorder %v1526, 0.0
        %v2047 = vand.u32 %v1526, 2147483648
        %v2048 = vsel %vm2046, %v2047, %v2045
        %v2049 = vrsqrt.pop %v1527
        %v2050 = vmul.f32 %v1527, %v2049
        %vm2051 = vcmp.eq.f32.partialorder %v1527, inf
        %v2052 = vsel %vm2051, %v1527, %v2050
        %vm2053 = vcmp.eq.f32.partialorder %v1527, 0.0
        %v2054 = vand.u32 %v1527, 2147483648
        %v2055 = vsel %vm2053, %v2054, %v2052
        %v2056 = vrsqrt.pop %v1528
        %v2057 = vmul.f32 %v1528, %v2056
        %vm2058 = vcmp.eq.f32.partialorder %v1528, inf
        %v2059 = vsel %vm2058, %v1528, %v2057
        %vm2060 = vcmp.eq.f32.partialorder %v1528, 0.0
        %v2061 = vand.u32 %v1528, 2147483648
        %v2062 = vsel %vm2060, %v2061, %v2059
        %v2063 = vrsqrt.pop %v1529
        %v2064 = vmul.f32 %v1529, %v2063
        %vm2065 = vcmp.eq.f32.partialorder %v1529, inf
        %v2066 = vsel %vm2065, %v1529, %v2064
        %vm2067 = vcmp.eq.f32.partialorder %v1529, 0.0
        %v2068 = vand.u32 %v1529, 2147483648
        %v2069 = vsel %vm2067, %v2068, %v2066
        %v2070 = vrsqrt.pop %v1530
        %v2071 = vmul.f32 %v1530, %v2070
        %vm2072 = vcmp.eq.f32.partialorder %v1530, inf
        %v2073 = vsel %vm2072, %v1530, %v2071
        %vm2074 = vcmp.eq.f32.partialorder %v1530, 0.0
        %v2075 = vand.u32 %v1530, 2147483648
        %v2076 = vsel %vm2074, %v2075, %v2073
        %v2077 = vrsqrt.pop %v1531
        %v2078 = vmul.f32 %v1531, %v2077
        %vm2079 = vcmp.eq.f32.partialorder %v1531, inf
        %v2080 = vsel %vm2079, %v1531, %v2078
        %vm2081 = vcmp.eq.f32.partialorder %v1531, 0.0
        %v2082 = vand.u32 %v1531, 2147483648
        %v2083 = vsel %vm2081, %v2082, %v2080
        %v2084 = vrsqrt.pop %v1532
        %v2085 = vmul.f32 %v1532, %v2084
        %vm2086 = vcmp.eq.f32.partialorder %v1532, inf
        %v2087 = vsel %vm2086, %v1532, %v2085
        %vm2088 = vcmp.eq.f32.partialorder %v1532, 0.0
        %v2089 = vand.u32 %v1532, 2147483648
        %v2090 = vsel %vm2088, %v2089, %v2087
        %v2091 = vrsqrt.pop %v1533
        %v2092 = vmul.f32 %v1533, %v2091
        %vm2093 = vcmp.eq.f32.partialorder %v1533, inf
        %v2094 = vsel %vm2093, %v1533, %v2092
        %vm2095 = vcmp.eq.f32.partialorder %v1533, 0.0
        %v2096 = vand.u32 %v1533, 2147483648
        %v2097 = vsel %vm2095, %v2096, %v2094
        %v2098 = vrsqrt.pop %v1534
        %v2099 = vmul.f32 %v1534, %v2098
        %vm2100 = vcmp.eq.f32.partialorder %v1534, inf
        %v2101 = vsel %vm2100, %v1534, %v2099
        %vm2102 = vcmp.eq.f32.partialorder %v1534, 0.0
        %v2103 = vand.u32 %v1534, 2147483648
        %v2104 = vsel %vm2102, %v2103, %v2101
        %v2105 = vrsqrt.pop %v1535
        %v2106 = vmul.f32 %v1535, %v2105
        %vm2107 = vcmp.eq.f32.partialorder %v1535, inf
        %v2108 = vsel %vm2107, %v1535, %v2106
        %vm2109 = vcmp.eq.f32.partialorder %v1535, 0.0
        %v2110 = vand.u32 %v1535, 2147483648
        %v2111 = vsel %vm2109, %v2110, %v2108
        %v2112 = vrsqrt.pop %v1536
        %v2113 = vmul.f32 %v1536, %v2112
        %vm2114 = vcmp.eq.f32.partialorder %v1536, inf
        %v2115 = vsel %vm2114, %v1536, %v2113
        %vm2116 = vcmp.eq.f32.partialorder %v1536, 0.0
        %v2117 = vand.u32 %v1536, 2147483648
        %v2118 = vsel %vm2116, %v2117, %v2115
        %v2119 = vrsqrt.pop %v1537
        %v2120 = vmul.f32 %v1537, %v2119
        %vm2121 = vcmp.eq.f32.partialorder %v1537, inf
        %v2122 = vsel %vm2121, %v1537, %v2120
        %vm2123 = vcmp.eq.f32.partialorder %v1537, 0.0
        %v2124 = vand.u32 %v1537, 2147483648
        %v2125 = vsel %vm2123, %v2124, %v2122
        %v2126 = vrsqrt.pop %v1538
        %v2127 = vmul.f32 %v1538, %v2126
        %vm2128 = vcmp.eq.f32.partialorder %v1538, inf
        %v2129 = vsel %vm2128, %v1538, %v2127
        %vm2130 = vcmp.eq.f32.partialorder %v1538, 0.0
        %v2131 = vand.u32 %v1538, 2147483648
        %v2132 = vsel %vm2130, %v2131, %v2129
        %v2133 = vrsqrt.pop %v1539
        %v2134 = vmul.f32 %v1539, %v2133
        %vm2135 = vcmp.eq.f32.partialorder %v1539, inf
        %v2136 = vsel %vm2135, %v1539, %v2134
        %vm2137 = vcmp.eq.f32.partialorder %v1539, 0.0
        %v2138 = vand.u32 %v1539, 2147483648
        %v2139 = vsel %vm2137, %v2138, %v2136
        %v2140 = vrsqrt.pop %v1540
        %v2141 = vmul.f32 %v1540, %v2140
        %vm2142 = vcmp.eq.f32.partialorder %v1540, inf
        %v2143 = vsel %vm2142, %v1540, %v2141
        %vm2144 = vcmp.eq.f32.partialorder %v1540, 0.0
        %v2145 = vand.u32 %v1540, 2147483648
        %v2146 = vsel %vm2144, %v2145, %v2143
        %v2147 = vrsqrt.pop %v1541
        %v2148 = vmul.f32 %v1541, %v2147
        %vm2149 = vcmp.eq.f32.partialorder %v1541, inf
        %v2150 = vsel %vm2149, %v1541, %v2148
        %vm2151 = vcmp.eq.f32.partialorder %v1541, 0.0
        %v2152 = vand.u32 %v1541, 2147483648
        %v2153 = vsel %vm2151, %v2152, %v2150
        %v2154 = vrsqrt.pop %v1542
        %v2155 = vmul.f32 %v1542, %v2154
        %vm2156 = vcmp.eq.f32.partialorder %v1542, inf
        %v2157 = vsel %vm2156, %v1542, %v2155
        %vm2158 = vcmp.eq.f32.partialorder %v1542, 0.0
        %v2159 = vand.u32 %v1542, 2147483648
        %v2160 = vsel %vm2158, %v2159, %v2157
        %v2161 = vrsqrt.pop %v1543
        %v2162 = vmul.f32 %v1543, %v2161
        %vm2163 = vcmp.eq.f32.partialorder %v1543, inf
        %v2164 = vsel %vm2163, %v1543, %v2162
        %vm2165 = vcmp.eq.f32.partialorder %v1543, 0.0
        %v2166 = vand.u32 %v1543, 2147483648
        %v2167 = vsel %vm2165, %v2166, %v2164
        %v2168 = vrsqrt.pop %v1544
        %v2169 = vmul.f32 %v1544, %v2168
        %vm2170 = vcmp.eq.f32.partialorder %v1544, inf
        %v2171 = vsel %vm2170, %v1544, %v2169
        %vm2172 = vcmp.eq.f32.partialorder %v1544, 0.0
        %v2173 = vand.u32 %v1544, 2147483648
        %v2174 = vsel %vm2172, %v2173, %v2171
        %v2175 = vrsqrt.pop %v1545
        %v2176 = vmul.f32 %v1545, %v2175
        %vm2177 = vcmp.eq.f32.partialorder %v1545, inf
        %v2178 = vsel %vm2177, %v1545, %v2176
        %vm2179 = vcmp.eq.f32.partialorder %v1545, 0.0
        %v2180 = vand.u32 %v1545, 2147483648
        %v2181 = vsel %vm2179, %v2180, %v2178
        %v2182 = vrsqrt.pop %v1546
        %v2183 = vmul.f32 %v1546, %v2182
        %vm2184 = vcmp.eq.f32.partialorder %v1546, inf
        %v2185 = vsel %vm2184, %v1546, %v2183
        %vm2186 = vcmp.eq.f32.partialorder %v1546, 0.0
        %v2187 = vand.u32 %v1546, 2147483648
        %v2188 = vsel %vm2186, %v2187, %v2185
        %v2189 = vrsqrt.pop %v1547
        %v2190 = vmul.f32 %v1547, %v2189
        %vm2191 = vcmp.eq.f32.partialorder %v1547, inf
        %v2192 = vsel %vm2191, %v1547, %v2190
        %vm2193 = vcmp.eq.f32.partialorder %v1547, 0.0
        %v2194 = vand.u32 %v1547, 2147483648
        %v2195 = vsel %vm2193, %v2194, %v2192
        %v2196 = vrsqrt.pop %v1548
        %v2197 = vmul.f32 %v1548, %v2196
        %vm2198 = vcmp.eq.f32.partialorder %v1548, inf
        %v2199 = vsel %vm2198, %v1548, %v2197
        %vm2200 = vcmp.eq.f32.partialorder %v1548, 0.0
        %v2201 = vand.u32 %v1548, 2147483648
        %v2202 = vsel %vm2200, %v2201, %v2199
        %v2203 = vrsqrt.pop %v1549
        %v2204 = vmul.f32 %v1549, %v2203
        %vm2205 = vcmp.eq.f32.partialorder %v1549, inf
        %v2206 = vsel %vm2205, %v1549, %v2204
        %vm2207 = vcmp.eq.f32.partialorder %v1549, 0.0
        %v2208 = vand.u32 %v1549, 2147483648
        %v2209 = vsel %vm2207, %v2208, %v2206
        %v2210 = vrsqrt.pop %v1550
        %v2211 = vmul.f32 %v1550, %v2210
        %vm2212 = vcmp.eq.f32.partialorder %v1550, inf
        %v2213 = vsel %vm2212, %v1550, %v2211
        %vm2214 = vcmp.eq.f32.partialorder %v1550, 0.0
        %v2215 = vand.u32 %v1550, 2147483648
        %v2216 = vsel %vm2214, %v2215, %v2213
        %v2217 = vrsqrt.pop %v1551
        %v2218 = vmul.f32 %v1551, %v2217
        %vm2219 = vcmp.eq.f32.partialorder %v1551, inf
        %v2220 = vsel %vm2219, %v1551, %v2218
        %vm2221 = vcmp.eq.f32.partialorder %v1551, 0.0
        %v2222 = vand.u32 %v1551, 2147483648
        %v2223 = vsel %vm2221, %v2222, %v2220
        %v2224 = vsub.f32 %v1558, 0.1
        %v2225 = vsub.f32 %v1565, 0.1
        %v2226 = vsub.f32 %v1572, 0.1
        %v2227 = vsub.f32 %v1579, 0.1
        %v2228 = vsub.f32 %v1586, 0.1
        %v2229 = vsub.f32 %v1593, 0.1
        %v2230 = vsub.f32 %v1600, 0.1
        %v2231 = vsub.f32 %v1607, 0.1
        %v2232 = vsub.f32 %v1614, 0.1
        %v2233 = vsub.f32 %v1621, 0.1
        %v2234 = vsub.f32 %v1628, 0.1
        %v2235 = vsub.f32 %v1635, 0.1
        %v2236 = vsub.f32 %v1642, 0.1
        %v2237 = vsub.f32 %v1649, 0.1
        %v2238 = vsub.f32 %v1656, 0.1
        %v2239 = vsub.f32 %v1663, 0.1
        %v2240 = vsub.f32 %v1670, 0.1
        %v2241 = vsub.f32 %v1677, 0.1
        %v2242 = vsub.f32 %v1684, 0.1
        %v2243 = vsub.f32 %v1691, 0.1
        %v2244 = vsub.f32 %v1698, 0.1
        %v2245 = vsub.f32 %v1705, 0.1
        %v2246 = vsub.f32 %v1712, 0.1
        %v2247 = vsub.f32 %v1719, 0.1
        %v2248 = vsub.f32 %v1726, 0.1
        %v2249 = vsub.f32 %v1733, 0.1
        %v2250 = vsub.f32 %v1740, 0.1
        %v2251 = vsub.f32 %v1747, 0.1
        %v2252 = vsub.f32 %v1754, 0.1
        %v2253 = vsub.f32 %v1761, 0.1
        %v2254 = vsub.f32 %v1768, 0.1
        %v2255 = vsub.f32 %v1775, 0.1
        %v2256 = vsub.f32 %v1782, 0.1
        %v2257 = vsub.f32 %v1789, 0.1
        %v2258 = vsub.f32 %v1796, 0.1
        %v2259 = vsub.f32 %v1803, 0.1
        %v2260 = vsub.f32 %v1810, 0.1
        %v2261 = vsub.f32 %v1817, 0.1
        %v2262 = vsub.f32 %v1824, 0.1
        %v2263 = vsub.f32 %v1831, 0.1
        %v2264 = vsub.f32 %v1838, 0.1
        %v2265 = vsub.f32 %v1845, 0.1
        %v2266 = vsub.f32 %v1852, 0.1
        %v2267 = vsub.f32 %v1859, 0.1
        %v2268 = vsub.f32 %v1866, 0.1
        %v2269 = vsub.f32 %v1873, 0.1
        %v2270 = vsub.f32 %v1880, 0.1
        %v2271 = vsub.f32 %v1887, 0.1
        %v2272 = vsub.f32 %v1894, 0.1
        %v2273 = vsub.f32 %v1901, 0.1
        %v2274 = vsub.f32 %v1908, 0.1
        %v2275 = vsub.f32 %v1915, 0.1
        %v2276 = vsub.f32 %v1922, 0.1
        %v2277 = vsub.f32 %v1929, 0.1
        %v2278 = vsub.f32 %v1936, 0.1
        %v2279 = vsub.f32 %v1943, 0.1
        %v2280 = vsub.f32 %v1950, 0.1
        %v2281 = vsub.f32 %v1957, 0.1
        %v2282 = vsub.f32 %v1964, 0.1
        %v2283 = vsub.f32 %v1971, 0.1
        %v2284 = vsub.f32 %v1978, 0.1
        %v2285 = vsub.f32 %v1985, 0.1
        %v2286 = vsub.f32 %v1992, 0.1
        %v2287 = vsub.f32 %v1999, 0.1
        %v2288 = vsub.f32 %v2006, 0.1
        %v2289 = vsub.f32 %v2013, 0.1
        %v2290 = vsub.f32 %v2020, 0.1
        %v2291 = vsub.f32 %v2027, 0.1
        %v2292 = vsub.f32 %v2034, 0.1
        %v2293 = vsub.f32 %v2041, 0.1
        %v2294 = vsub.f32 %v2048, 0.1
        %v2295 = vsub.f32 %v2055, 0.1
        %v2296 = vsub.f32 %v2062, 0.1
        %v2297 = vsub.f32 %v2069, 0.1
        %v2298 = vsub.f32 %v2076, 0.1
        %v2299 = vsub.f32 %v2083, 0.1
        %v2300 = vsub.f32 %v2090, 0.1
        %v2301 = vsub.f32 %v2097, 0.1
        %v2302 = vsub.f32 %v2104, 0.1
        %v2303 = vsub.f32 %v2111, 0.1
        %v2304 = vsub.f32 %v2118, 0.1
        %v2305 = vsub.f32 %v2125, 0.1
        %v2306 = vsub.f32 %v2132, 0.1
        %v2307 = vsub.f32 %v2139, 0.1
        %v2308 = vsub.f32 %v2146, 0.1
        %v2309 = vsub.f32 %v2153, 0.1
        %v2310 = vsub.f32 %v2160, 0.1
        %v2311 = vsub.f32 %v2167, 0.1
        %v2312 = vsub.f32 %v2174, 0.1
        %v2313 = vsub.f32 %v2181, 0.1
        %v2314 = vsub.f32 %v2188, 0.1
        %v2315 = vsub.f32 %v2195, 0.1
        %v2316 = vsub.f32 %v2202, 0.1
        %v2317 = vsub.f32 %v2209, 0.1
        %v2318 = vsub.f32 %v2216, 0.1
        %v2319 = vsub.f32 %v2223, 0.1
        %v2320 = vmax.f32 %v2224, 0.0
        %v2321 = vmax.f32 %v2225, 0.0
        %v2322 = vmax.f32 %v2226, 0.0
        %v2323 = vmax.f32 %v2227, 0.0
        %v2324 = vmax.f32 %v2228, 0.0
        %v2325 = vmax.f32 %v2229, 0.0
        %v2326 = vmax.f32 %v2230, 0.0
        %v2327 = vmax.f32 %v2231, 0.0
        %v2328 = vmax.f32 %v2232, 0.0
        %v2329 = vmax.f32 %v2233, 0.0
        %v2330 = vmax.f32 %v2234, 0.0
        %v2331 = vmax.f32 %v2235, 0.0
        %v2332 = vmax.f32 %v2236, 0.0
        %v2333 = vmax.f32 %v2237, 0.0
        %v2334 = vmax.f32 %v2238, 0.0
        %v2335 = vmax.f32 %v2239, 0.0
        %v2336 = vmax.f32 %v2240, 0.0
        %v2337 = vmax.f32 %v2241, 0.0
        %v2338 = vmax.f32 %v2242, 0.0
        %v2339 = vmax.f32 %v2243, 0.0
        %v2340 = vmax.f32 %v2244, 0.0
        %v2341 = vmax.f32 %v2245, 0.0
        %v2342 = vmax.f32 %v2246, 0.0
        %v2343 = vmax.f32 %v2247, 0.0
        %v2344 = vmax.f32 %v2248, 0.0
        %v2345 = vmax.f32 %v2249, 0.0
        %v2346 = vmax.f32 %v2250, 0.0
        %v2347 = vmax.f32 %v2251, 0.0
        %v2348 = vmax.f32 %v2252, 0.0
        %v2349 = vmax.f32 %v2253, 0.0
        %v2350 = vmax.f32 %v2254, 0.0
        %v2351 = vmax.f32 %v2255, 0.0
        %v2352 = vmax.f32 %v2256, 0.0
        %v2353 = vmax.f32 %v2257, 0.0
        %v2354 = vmax.f32 %v2258, 0.0
        %v2355 = vmax.f32 %v2259, 0.0
        %v2356 = vmax.f32 %v2260, 0.0
        %v2357 = vmax.f32 %v2261, 0.0
        %v2358 = vmax.f32 %v2262, 0.0
        %v2359 = vmax.f32 %v2263, 0.0
        %v2360 = vmax.f32 %v2264, 0.0
        %v2361 = vmax.f32 %v2265, 0.0
        %v2362 = vmax.f32 %v2266, 0.0
        %v2363 = vmax.f32 %v2267, 0.0
        %v2364 = vmax.f32 %v2268, 0.0
        %v2365 = vmax.f32 %v2269, 0.0
        %v2366 = vmax.f32 %v2270, 0.0
        %v2367 = vmax.f32 %v2271, 0.0
        %v2368 = vmax.f32 %v2272, 0.0
        %v2369 = vmax.f32 %v2273, 0.0
        %v2370 = vmax.f32 %v2274, 0.0
        %v2371 = vmax.f32 %v2275, 0.0
        %v2372 = vmax.f32 %v2276, 0.0
        %v2373 = vmax.f32 %v2277, 0.0
        %v2374 = vmax.f32 %v2278, 0.0
        %v2375 = vmax.f32 %v2279, 0.0
        %v2376 = vmax.f32 %v2280, 0.0
        %v2377 = vmax.f32 %v2281, 0.0
        %v2378 = vmax.f32 %v2282, 0.0
        %v2379 = vmax.f32 %v2283, 0.0
        %v2380 = vmax.f32 %v2284, 0.0
        %v2381 = vmax.f32 %v2285, 0.0
        %v2382 = vmax.f32 %v2286, 0.0
        %v2383 = vmax.f32 %v2287, 0.0
        %v2384 = vmax.f32 %v2288, 0.0
        %v2385 = vmax.f32 %v2289, 0.0
        %v2386 = vmax.f32 %v2290, 0.0
        %v2387 = vmax.f32 %v2291, 0.0
        %v2388 = vmax.f32 %v2292, 0.0
        %v2389 = vmax.f32 %v2293, 0.0
        %v2390 = vmax.f32 %v2294, 0.0
        %v2391 = vmax.f32 %v2295, 0.0
        %v2392 = vmax.f32 %v2296, 0.0
        %v2393 = vmax.f32 %v2297, 0.0
        %v2394 = vmax.f32 %v2298, 0.0
        %v2395 = vmax.f32 %v2299, 0.0
        %v2396 = vmax.f32 %v2300, 0.0
        %v2397 = vmax.f32 %v2301, 0.0
        %v2398 = vmax.f32 %v2302, 0.0
        %v2399 = vmax.f32 %v2303, 0.0
        %v2400 = vmax.f32 %v2304, 0.0
        %v2401 = vmax.f32 %v2305, 0.0
        %v2402 = vmax.f32 %v2306, 0.0
        %v2403 = vmax.f32 %v2307, 0.0
        %v2404 = vmax.f32 %v2308, 0.0
        %v2405 = vmax.f32 %v2309, 0.0
        %v2406 = vmax.f32 %v2310, 0.0
        %v2407 = vmax.f32 %v2311, 0.0
        %v2408 = vmax.f32 %v2312, 0.0
        %v2409 = vmax.f32 %v2313, 0.0
        %v2410 = vmax.f32 %v2314, 0.0
        %v2411 = vmax.f32 %v2315, 0.0
        %v2412 = vmax.f32 %v2316, 0.0
        %v2413 = vmax.f32 %v2317, 0.0
        %v2414 = vmax.f32 %v2318, 0.0
        %v2415 = vmax.f32 %v2319, 0.0
        %2416 = vst [vmem:[%s300] sm:$0xff] %v2320
        %2417 = vst [vmem:[%s300 + $0x8] sm:$0xff] %v2321
        %2418 = vst [vmem:[%s300 + $0x10] sm:$0xff] %v2322
        %2419 = vst [vmem:[%s300 + $0x18] sm:$0xff] %v2323
        %2420 = vst [vmem:[%s300 + $0x20] sm:$0xff] %v2324
        %2421 = vst [vmem:[%s300 + $0x28] sm:$0xff] %v2325
        %2422 = vst [vmem:[%s300 + $0x30] sm:$0xff] %v2326
        %2423 = vst [vmem:[%s300 + $0x38] sm:$0xff] %v2327
        %2424 = vst [vmem:[%s300 + $0x40] sm:$0xff] %v2328
        %2425 = vst [vmem:[%s300 + $0x48] sm:$0xff] %v2329
        %2426 = vst [vmem:[%s300 + $0x50] sm:$0xff] %v2330
        %2427 = vst [vmem:[%s300 + $0x58] sm:$0xff] %v2331
        %2428 = vst [vmem:[%s300 + $0x60] sm:$0xff] %v2332
        %2429 = vst [vmem:[%s300 + $0x68] sm:$0xff] %v2333
        %2430 = vst [vmem:[%s300 + $0x70] sm:$0xff] %v2334
        %2431 = vst [vmem:[%s300 + $0x78] sm:$0xff] %v2335
        %2432 = vst [vmem:[%s300 + $0x80] sm:$0xff] %v2336
        %2433 = vst [vmem:[%s300 + $0x88] sm:$0xff] %v2337
        %2434 = vst [vmem:[%s300 + $0x90] sm:$0xff] %v2338
        %2435 = vst [vmem:[%s300 + $0x98] sm:$0xff] %v2339
        %2436 = vst [vmem:[%s300 + $0xa0] sm:$0xff] %v2340
        %2437 = vst [vmem:[%s300 + $0xa8] sm:$0xff] %v2341
        %2438 = vst [vmem:[%s300 + $0xb0] sm:$0xff] %v2342
        %2439 = vst [vmem:[%s300 + $0xb8] sm:$0xff] %v2343
        %2440 = vst [vmem:[%s300 + $0xc0] sm:$0xff] %v2344
        %2441 = vst [vmem:[%s300 + $0xc8] sm:$0xff] %v2345
        %2442 = vst [vmem:[%s300 + $0xd0] sm:$0xff] %v2346
        %2443 = vst [vmem:[%s300 + $0xd8] sm:$0xff] %v2347
        %2444 = vst [vmem:[%s300 + $0xe0] sm:$0xff] %v2348
        %2445 = vst [vmem:[%s300 + $0xe8] sm:$0xff] %v2349
        %2446 = vst [vmem:[%s300 + $0xf0] sm:$0xff] %v2350
        %2447 = vst [vmem:[%s300 + $0xf8] sm:$0xff] %v2351
        %2448 = vst [vmem:[%s300 + $0x100] sm:$0xff] %v2352
        %2449 = vst [vmem:[%s300 + $0x108] sm:$0xff] %v2353
        %2450 = vst [vmem:[%s300 + $0x110] sm:$0xff] %v2354
        %2451 = vst [vmem:[%s300 + $0x118] sm:$0xff] %v2355
        %2452 = vst [vmem:[%s300 + $0x120] sm:$0xff] %v2356
        %2453 = vst [vmem:[%s300 + $0x128] sm:$0xff] %v2357
        %2454 = vst [vmem:[%s300 + $0x130] sm:$0xff] %v2358
        %2455 = vst [vmem:[%s300 + $0x138] sm:$0xff] %v2359
        %2456 = vst [vmem:[%s300 + $0x140] sm:$0xff] %v2360
        %2457 = vst [vmem:[%s300 + $0x148] sm:$0xff] %v2361
        %2458 = vst [vmem:[%s300 + $0x150] sm:$0xff] %v2362
        %2459 = vst [vmem:[%s300 + $0x158] sm:$0xff] %v2363
        %2460 = vst [vmem:[%s300 + $0x160] sm:$0xff] %v2364
        %2461 = vst [vmem:[%s300 + $0x168] sm:$0xff] %v2365
        %2462 = vst [vmem:[%s300 + $0x170] sm:$0xff] %v2366
        %2463 = vst [vmem:[%s300 + $0x178] sm:$0xff] %v2367
        %2464 = vst [vmem:[%s300 + $0x180] sm:$0xff] %v2368
        %2465 = vst [vmem:[%s300 + $0x188] sm:$0xff] %v2369
        %2466 = vst [vmem:[%s300 + $0x190] sm:$0xff] %v2370
        %2467 = vst [vmem:[%s300 + $0x198] sm:$0xff] %v2371
        %2468 = vst [vmem:[%s300 + $0x1a0] sm:$0xff] %v2372
        %2469 = vst [vmem:[%s300 + $0x1a8] sm:$0xff] %v2373
        %2470 = vst [vmem:[%s300 + $0x1b0] sm:$0xff] %v2374
        %2471 = vst [vmem:[%s300 + $0x1b8] sm:$0xff] %v2375
        %2472 = vst [vmem:[%s300 + $0x1c0] sm:$0xff] %v2376
        %2473 = vst [vmem:[%s300 + $0x1c8] sm:$0xff] %v2377
        %2474 = vst [vmem:[%s300 + $0x1d0] sm:$0xff] %v2378
        %2475 = vst [vmem:[%s300 + $0x1d8] sm:$0xff] %v2379
        %2476 = vst [vmem:[%s300 + $0x1e0] sm:$0xff] %v2380
        %2477 = vst [vmem:[%s300 + $0x1e8] sm:$0xff] %v2381
        %2478 = vst [vmem:[%s300 + $0x1f0] sm:$0xff] %v2382
        %2479 = vst [vmem:[%s300 + $0x1f8] sm:$0xff] %v2383
        %2480 = vst [vmem:[%s300 + $0x200] sm:$0xff] %v2384
        %2481 = vst [vmem:[%s300 + $0x208] sm:$0xff] %v2385
        %2482 = vst [vmem:[%s300 + $0x210] sm:$0xff] %v2386
        %2483 = vst [vmem:[%s300 + $0x218] sm:$0xff] %v2387
        %2484 = vst [vmem:[%s300 + $0x220] sm:$0xff] %v2388
        %2485 = vst [vmem:[%s300 + $0x228] sm:$0xff] %v2389
        %2486 = vst [vmem:[%s300 + $0x230] sm:$0xff] %v2390
        %2487 = vst [vmem:[%s300 + $0x238] sm:$0xff] %v2391
        %2488 = vst [vmem:[%s300 + $0x240] sm:$0xff] %v2392
        %2489 = vst [vmem:[%s300 + $0x248] sm:$0xff] %v2393
        %2490 = vst [vmem:[%s300 + $0x250] sm:$0xff] %v2394
        %2491 = vst [vmem:[%s300 + $0x258] sm:$0xff] %v2395
        %2492 = vst [vmem:[%s300 + $0x260] sm:$0xff] %v2396
        %2493 = vst [vmem:[%s300 + $0x268] sm:$0xff] %v2397
        %2494 = vst [vmem:[%s300 + $0x270] sm:$0xff] %v2398
        %2495 = vst [vmem:[%s300 + $0x278] sm:$0xff] %v2399
        %2496 = vst [vmem:[%s300 + $0x280] sm:$0xff] %v2400
        %2497 = vst [vmem:[%s300 + $0x288] sm:$0xff] %v2401
        %2498 = vst [vmem:[%s300 + $0x290] sm:$0xff] %v2402
        %2499 = vst [vmem:[%s300 + $0x298] sm:$0xff] %v2403
        %2500 = vst [vmem:[%s300 + $0x2a0] sm:$0xff] %v2404
        %2501 = vst [vmem:[%s300 + $0x2a8] sm:$0xff] %v2405
        %2502 = vst [vmem:[%s300 + $0x2b0] sm:$0xff] %v2406
        %2503 = vst [vmem:[%s300 + $0x2b8] sm:$0xff] %v2407
        %2504 = vst [vmem:[%s300 + $0x2c0] sm:$0xff] %v2408
        %2505 = vst [vmem:[%s300 + $0x2c8] sm:$0xff] %v2409
        %2506 = vst [vmem:[%s300 + $0x2d0] sm:$0xff] %v2410
        %2507 = vst [vmem:[%s300 + $0x2d8] sm:$0xff] %v2411
        %2508 = vst [vmem:[%s300 + $0x2e0] sm:$0xff] %v2412
        %2509 = vst [vmem:[%s300 + $0x2e8] sm:$0xff] %v2413
        %2510 = vst [vmem:[%s300 + $0x2f0] sm:$0xff] %v2414
        %2511 = vst [vmem:[%s300 + $0x2f8] sm:$0xff] %v2415
        %s2512 = sand.u32 %s161, 1
        %s2513 = scalar_lea.sflag [#allocation3], %s2512
        %s2514 = sand.u32 %s161, 1
        %s2515 = smul.addr %s2514, 768
        %s2516 = scalar_lea.vmem [#allocation2], %s2515
        // Predicated region
        $region37: #{tpu_custom_call.1} parent=35 // pred_check
          %p2517 = pneg %p171
        $region38: #{tpu_custom_call.1} parent=35 // pred_check_branch
          %2519 = sbr.rel (%p2517) target = $region40
        $region39: #{tpu_custom_call.1} parent=35 // pred_region
          %s2520 = smul.u32 32, %s24
          %s2521 = smul.u32 3, %s25
          %s2523 = ssub.s32 12288, 12288
          %2524 = vsyncadd %s2513, %s2523
          %s2525 = smul.addr %s2520, 3
          %s2526 = sadd.s32 %s2521, %s2525
          %s2527 = smul.addr %s23, 96
          %s2528 = sadd.s32 %s2526, %s2527
          %s2529 = smul.addr %s2528, 128
          %s2530 = scalar_lea.hbm %s4, %s2529
          %s2531 = sshll.u32 %s2516, 4
          %s2532 = int_to_ptr.vmem [resolvable:$true] %s2531
          %2537 = dma.vmem_to_hbm [thread:$0]  %s2532, 12288, %s2530, %s2513, 384, 384, 24
        $region40: #{tpu_custom_call.1} parent=35 // pred_fallthru
          _
      $region36: #{tpu_custom_call.1} parent=5 // pred_fallthru
        _
      %p2538 = scmp.le.s32.totalorder 2, %s13
      // Predicated region
      $region41: #{tpu_custom_call.1} parent=5 // pred_check
        %p2539 = pneg %p2538
      $region42: #{tpu_custom_call.1} parent=5 // pred_check_branch
        %2541 = sbr.rel (%p2539) target = $region44
      $region43: #{tpu_custom_call.1} parent=5 // pred_region
        %s2542 = ssub.s32 %s13, 2
        // Predicated region
        $region45: #{tpu_custom_call.1} parent=43 // pred_check
          %p2543 = pneg %p177
        $region46: #{tpu_custom_call.1} parent=43 // pred_check_branch
          %2545 = sbr.rel (%p2543) target = $region48
        $region47: #{tpu_custom_call.1} parent=43 // pred_region
          %s2546 = sand.u32 %s162, 1
          %s2547 = scalar_lea.sflag [#allocation3], %s2546
          %s2548 = sand.u32 %s162, 1
          %s2549 = smul.addr %s2548, 768
          %s2550 = scalar_lea.vmem [#allocation2], %s2549
          %2551 = dma.done %s2547, 12288
        $region48: #{tpu_custom_call.1} parent=43 // pred_fallthru
          _
      $region44: #{tpu_custom_call.1} parent=5 // pred_fallthru
        _
    $region6: #{tpu_custom_call.1} parent=1 // loop_footer
      %s17 = sadd.s32 1, %s13
    $region7: #{tpu_custom_call.1} parent=1 // loop_footer_branch
      %12 = sbr.rel target = $region3
    $region8: #{tpu_custom_call.1} parent=1 // loop_exit
      _
    %2552 = vsyncpa [#allocation3], 1
    %s2553 = scalar_lea.sflag [#allocation3], 1
    %2554 = vsyncpa %s2553, 1

</llo_original>
